<compile_context>
chip_gen: v6e
topology: v6e:2x2x1
jax: 0.10.0
libtpu: 0.0.40
codegen_flags: <defaults>
</compile_context>

<pallas_src>
import functools

import jax
import jax.numpy as jnp
from jax import lax
from jax.experimental import pallas as pl
from jax.experimental.pallas import tpu as pltpu

HIDDEN = 1000  # fixed "1000" width in linear_branch_DeepONet


def _round_up(x, m):
  return (x + m - 1) // m * m


def _block_diag(a, b):
  r1, c1 = a.shape
  r2, c2 = b.shape
  return jnp.concatenate([
      jnp.concatenate([a, jnp.zeros((r1, c2), a.dtype)], axis=1),
      jnp.concatenate([jnp.zeros((r2, c1), b.dtype), b], axis=1),
  ], axis=0)


def possion_onet_kernel(cf, b1_ref, b2_ref, t_ref, m1_ref, m2_ref, tw0_ref,
                        tw123_ref, bias_ref, out_ref):
  """Fused, packed, collapsed possionONet forward for one batch tile.

  Activations arrive in natural (tm, features) layout; all intermediates are
  feature-major (features, tm) with the batch on the lane axis, obtained via
  A @ B^T-style dot_generals (no explicit transposes).
  """
  f32 = jnp.float32
  # w (r, k) contracted against x (tm, k) -> (r, tm); MXU handles trans_b natively.
  dot_t = lambda w, x: lax.dot_general(
      w, x, (((1,), (1,)), ((), ())), preferred_element_type=f32)
  dot = functools.partial(jnp.dot, preferred_element_type=f32)

  # Branch contribution for both nets at once; the last row of `a` is the folded
  # trunk-output-bias term (vT fold).
  a = dot_t(m1_ref[...], b1_ref[...]) + dot_t(m2_ref[...], b2_ref[...])  # (cf+1, tm)

  biases = bias_ref[...]                       # (4*cf, 1)
  tw123 = tw123_ref[...]                       # (3*cf, cf)

  # Packed trunk MLP (both nets block-diagonal), feature-major.
  h = jnp.tanh(dot_t(tw0_ref[...], t_ref[...]) + biases[0:cf, :])        # (cf, tm)
  for li in range(3):
    w = tw123[li * cf:(li + 1) * cf, :]
    b = biases[(li + 1) * cf:(li + 2) * cf, :]
    h = jnp.tanh(dot(w, h) + b)

  # rowsum(branch_factor * trunk_hidden) + folded bias term -> lane-dense (1, tm).
  out_ref[...] = (jnp.sum(a[0:cf, :] * h, axis=0, keepdims=True)
                  + a[cf:cf + 1, :])


def make_deeponet_params(key, branch_features, trunk_features, common_features):
  """Deterministic parameter set for one linear_branch_DeepONet.

  Weights stored (in, out); biases and last_layer_weights stored (1, out)."""
  ks = jax.random.split(key, 12)
  p = {}
  p["wb"] = jax.random.normal(ks[0], (branch_features, HIDDEN), jnp.float32) * 0.05
  dims = [trunk_features] + [common_features] * 4 + [HIDDEN]
  for li in range(5):
    p[f"tw{li}"] = jax.random.normal(
        ks[1 + 2 * li], (dims[li], dims[li + 1]), jnp.float32) * 0.05
    p[f"tb{li}"] = jax.random.normal(
        ks[2 + 2 * li], (1, dims[li + 1]), jnp.float32) * 0.05
  p["wlast"] = jax.random.normal(ks[11], (1, HIDDEN), jnp.float32)
  return p


def _collapse(p):
  """Fold wlast, tw4, tb4 into the branch weights (kills the HIDDEN=1000 dim)."""
  hp = jax.lax.Precision.HIGHEST
  wblT = (p["wb"] * p["wlast"]).T                         # (HIDDEN, bf)
  MT = jnp.dot(p["tw4"], wblT, precision=hp)              # (cf, bf)
  vT = jnp.dot(p["tb4"], wblT, precision=hp)              # (1, bf)
  return MT, vT


def _pack_weights(p1, p2):
  """Pack both collapsed nets into one block-diagonal net in kernel layout."""
  MT1, vT1 = _collapse(p1)
  MT2, vT2 = _collapse(p2)
  cf1, cf2 = MT1.shape[0], MT2.shape[0]
  cf = cf1 + cf2
  # Branch matrices with the folded trunk-bias row appended (vT fold).
  m1 = jnp.concatenate(
      [MT1, jnp.zeros((cf2, MT1.shape[1]), jnp.float32), vT1], axis=0)   # (cf+1, bf1)
  m2 = jnp.concatenate(
      [jnp.zeros((cf1, MT2.shape[1]), jnp.float32), MT2, vT2], axis=0)   # (cf+1, bf2)
  # Trunk layer 0: both nets consume the same trunk input -> just stack rows.
  tw0 = jnp.concatenate([p1["tw0"].T, p2["tw0"].T], axis=0)              # (cf, tf)
  # Trunk layers 1..3: block-diagonal, stacked into one slab.
  tw123 = jnp.concatenate(
      [_block_diag(p1[f"tw{li}"].T, p2[f"tw{li}"].T) for li in (1, 2, 3)],
      axis=0)                                                            # (3cf, cf)
  # Biases for layers 0..3, one sublane-aligned slab.
  biases = jnp.concatenate(
      [jnp.concatenate([p1[f"tb{li}"].T, p2[f"tb{li}"].T], axis=0)
       for li in (0, 1, 2, 3)], axis=0)                                  # (4cf, 1)
  weights = [w.astype(jnp.float32) for w in (m1, m2, tw0, tw123, biases)]
  return cf, weights


def possion_onet_forward(branch1, branch2, trunk, params1, params2, *, tm=2048):
  B, bf1 = branch1.shape
  bf2 = branch2.shape[1]
  tf = trunk.shape[1]

  cf, weights = _pack_weights(params1, params2)

  # Lane-dense batch tile (multiple of 128).  Clamp so the grid has >=2 steps
  # whenever B > 128: v7x megacore shards the ("parallel",) batch axis across
  # its two TensorCores, and a 1-step grid would idle one of them.
  half = _round_up(max(pl.cdiv(B, 2), 1), 128)
  tm_eff = max(128, min(_round_up(tm, 128), half))
  grid = pl.cdiv(B, tm_eff)

  # Activations in natural (B, f) layout -- no wrapper-side concat/transpose/pad.
  act_specs = [
      pl.BlockSpec((tm_eff, bf1), lambda i: (i, 0)),
      pl.BlockSpec((tm_eff, bf2), lambda i: (i, 0)),
      pl.BlockSpec((tm_eff, tf), lambda i: (i, 0)),
  ]
  # Weights: full-array blocks with a constant index -> resident across steps.
  w_specs = [pl.BlockSpec(w.shape, lambda i: (0, 0)) for w in weights]
  out_spec = pl.BlockSpec((1, tm_eff), lambda i: (0, i))

  out = pl.pallas_call(
      functools.partial(possion_onet_kernel, cf),
      out_shape=jax.ShapeDtypeStruct((1, B), jnp.float32),
      grid_spec=pltpu.PrefetchScalarGridSpec(
          num_scalar_prefetch=0,
          grid=(grid,),
          in_specs=act_specs + w_specs,
          out_specs=out_spec,
      ),
      compiler_params=pltpu.CompilerParams(
          dimension_semantics=("parallel",)),
  )(branch1.astype(jnp.float32), branch2.astype(jnp.float32),
    trunk.astype(jnp.float32), *weights)
  return out.reshape(B, 1)


def possion_onet_reference(branch1, branch2, trunk, params1, params2):
  """Pure-JAX reference mirroring the PyTorch forward (no collapse, no packing)."""
  def one(bx, tx, p):
    branch_out = bx @ p["wb"]
    h = tx
    for li in range(4):
      h = jnp.tanh(h @ p[f"tw{li}"] + p[f"tb{li}"])
    trunk_out = h @ p["tw4"] + p["tb4"]
    return jnp.sum(branch_out * trunk_out * p["wlast"], axis=1, keepdims=True)
  return one(branch1, trunk, params1) + one(branch2, trunk, params2)


if __name__ == "__main__":
  # Small shapes consistent with the module:
  #   branch1_features=16, branch2_features=24, trunk_features=2 (x,y coords),
  #   common_features1=32, common_features2=48.  batch=192 is deliberately not a
  #   multiple of the tile so the >=2-step clamp (tm_eff=128, grid=2) and the
  #   Pallas edge-block path are both exercised.
  B = 192
  bf1, bf2, tf = 16, 24, 2
  cf1, cf2 = 32, 48

  key = jax.random.PRNGKey(0)
  k_b1, k_b2, k_t, k_p1, k_p2 = jax.random.split(key, 5)

  branch1 = jax.random.normal(k_b1, (B, bf1), jnp.float32)
  branch2 = jax.random.normal(k_b2, (B, bf2), jnp.float32)
  trunk = jax.random.normal(k_t, (B, tf), jnp.float32)

  params1 = make_deeponet_params(k_p1, bf1, tf, cf1)
  params2 = make_deeponet_params(k_p2, bf2, tf, cf2)

  out = possion_onet_forward(branch1, branch2, trunk, params1, params2)
  out = jax.block_until_ready(out)

  ref = possion_onet_reference(branch1, branch2, trunk, params1, params2)
  assert out.shape == (B, 1)
  assert jnp.allclose(out, ref, rtol=1e-3, atol=1e-3), (out, ref)

  print("KERNEL_OK")
</pallas_src>

<mosaic_0001>
module attributes {stable_mosaic.version = 11 : i64} {
  func.func @possion_onet_kernel(%arg0: i32, %arg1: memref<128x16xf32, #tpu.memory_space<vmem>>, %arg2: memref<128x24xf32, #tpu.memory_space<vmem>>, %arg3: memref<128x2xf32, #tpu.memory_space<vmem>>, %arg4: memref<81x16xf32, #tpu.memory_space<vmem>>, %arg5: memref<81x24xf32, #tpu.memory_space<vmem>>, %arg6: memref<80x2xf32, #tpu.memory_space<vmem>>, %arg7: memref<240x80xf32, #tpu.memory_space<vmem>>, %arg8: memref<320x1xf32, #tpu.memory_space<vmem>>, %arg9: memref<1x128xf32, #tpu.memory_space<vmem>>) attributes {dimension_semantics = [#tpu.dimension_semantics<parallel>], iteration_bounds = array<i64: 2>, scalar_prefetch = 0 : i64, scratch_operands = 0 : i64, tpu.core_type = #tpu.core_type<tc>, window_params = [{transform_indices = @transform_0, window_bounds = array<i64: 128, 16>}, {transform_indices = @transform_1, window_bounds = array<i64: 128, 24>}, {transform_indices = @transform_2, window_bounds = array<i64: 128, 2>}, {pipeline_mode = #tpu.pipeline_mode<synchronous>, transform_indices = @transform_3, window_bounds = array<i64: 81, 16>}, {pipeline_mode = #tpu.pipeline_mode<synchronous>, transform_indices = @transform_4, window_bounds = array<i64: 81, 24>}, {pipeline_mode = #tpu.pipeline_mode<synchronous>, transform_indices = @transform_5, window_bounds = array<i64: 80, 2>}, {pipeline_mode = #tpu.pipeline_mode<synchronous>, transform_indices = @transform_6, window_bounds = array<i64: 240, 80>}, {pipeline_mode = #tpu.pipeline_mode<synchronous>, transform_indices = @transform_7, window_bounds = array<i64: 320, 1>}, {transform_indices = @transform_8, window_bounds = array<i64: 1, 128>}]} {
    %c0 = arith.constant 0 : index
    %c0_0 = arith.constant 0 : index
    %0 = vector.load %arg4[%c0, %c0_0] : memref<81x16xf32, #tpu.memory_space<vmem>>, vector<81x16xf32>
    %c0_1 = arith.constant 0 : index
    %c0_2 = arith.constant 0 : index
    %1 = vector.load %arg1[%c0_1, %c0_2] : memref<128x16xf32, #tpu.memory_space<vmem>>, vector<128x16xf32>
    %cst = arith.constant dense<0.000000e+00> : vector<81x128xf32>
    %2 = tpu.matmul %0, %1, %cst {dimension_numbers = #tpu.dot_dimension_numbers<[1], [1], [0], [0], [0, 0, 1, 0], [], []>} : vector<81x16xf32>, vector<128x16xf32>, vector<81x128xf32> -> vector<81x128xf32>
    %c0_3 = arith.constant 0 : index
    %c0_4 = arith.constant 0 : index
    %3 = vector.load %arg5[%c0_3, %c0_4] : memref<81x24xf32, #tpu.memory_space<vmem>>, vector<81x24xf32>
    %c0_5 = arith.constant 0 : index
    %c0_6 = arith.constant 0 : index
    %4 = vector.load %arg2[%c0_5, %c0_6] : memref<128x24xf32, #tpu.memory_space<vmem>>, vector<128x24xf32>
    %cst_7 = arith.constant dense<0.000000e+00> : vector<81x128xf32>
    %5 = tpu.matmul %3, %4, %cst_7 {dimension_numbers = #tpu.dot_dimension_numbers<[1], [1], [0], [0], [0, 0, 1, 0], [], []>} : vector<81x24xf32>, vector<128x24xf32>, vector<81x128xf32> -> vector<81x128xf32>
    %6 = arith.addf %2, %5 : vector<81x128xf32>
    %c0_8 = arith.constant 0 : index
    %c0_9 = arith.constant 0 : index
    %7 = vector.load %arg8[%c0_8, %c0_9] : memref<320x1xf32, #tpu.memory_space<vmem>>, vector<320x1xf32>
    %c0_10 = arith.constant 0 : index
    %c0_11 = arith.constant 0 : index
    %8 = vector.load %arg7[%c0_10, %c0_11] : memref<240x80xf32, #tpu.memory_space<vmem>>, vector<240x80xf32>
    %c0_12 = arith.constant 0 : index
    %c0_13 = arith.constant 0 : index
    %9 = vector.load %arg6[%c0_12, %c0_13] : memref<80x2xf32, #tpu.memory_space<vmem>>, vector<80x2xf32>
    %c0_14 = arith.constant 0 : index
    %c0_15 = arith.constant 0 : index
    %10 = vector.load %arg3[%c0_14, %c0_15] : memref<128x2xf32, #tpu.memory_space<vmem>>, vector<128x2xf32>
    %cst_16 = arith.constant dense<0.000000e+00> : vector<80x128xf32>
    %11 = tpu.matmul %9, %10, %cst_16 {dimension_numbers = #tpu.dot_dimension_numbers<[1], [1], [0], [0], [0, 0, 1, 0], [], []>} : vector<80x2xf32>, vector<128x2xf32>, vector<80x128xf32> -> vector<80x128xf32>
    %12 = vector.extract_strided_slice %7 {offsets = [0, 0], sizes = [80, 1], strides = [1, 1]} : vector<320x1xf32> to vector<80x1xf32>
    %13 = vector.broadcast %12 : vector<80x1xf32> to vector<80x128xf32>
    %14 = arith.addf %11, %13 : vector<80x128xf32>
    %15 = math.tanh %14 : vector<80x128xf32>
    %16 = vector.extract_strided_slice %8 {offsets = [0, 0], sizes = [80, 80], strides = [1, 1]} : vector<240x80xf32> to vector<80x80xf32>
    %17 = vector.extract_strided_slice %7 {offsets = [80, 0], sizes = [80, 1], strides = [1, 1]} : vector<320x1xf32> to vector<80x1xf32>
    %cst_17 = arith.constant dense<0.000000e+00> : vector<80x128xf32>
    %18 = tpu.matmul %16, %15, %cst_17 {dimension_numbers = #tpu.dot_dimension_numbers<[1], [0], [0], [1], [0, 0, 1, 1], [], []>} : vector<80x80xf32>, vector<80x128xf32>, vector<80x128xf32> -> vector<80x128xf32>
    %19 = vector.broadcast %17 : vector<80x1xf32> to vector<80x128xf32>
    %20 = arith.addf %18, %19 : vector<80x128xf32>
    %21 = math.tanh %20 : vector<80x128xf32>
    %22 = vector.extract_strided_slice %8 {offsets = [80, 0], sizes = [80, 80], strides = [1, 1]} : vector<240x80xf32> to vector<80x80xf32>
    %23 = vector.extract_strided_slice %7 {offsets = [160, 0], sizes = [80, 1], strides = [1, 1]} : vector<320x1xf32> to vector<80x1xf32>
    %cst_18 = arith.constant dense<0.000000e+00> : vector<80x128xf32>
    %24 = tpu.matmul %22, %21, %cst_18 {dimension_numbers = #tpu.dot_dimension_numbers<[1], [0], [0], [1], [0, 0, 1, 1], [], []>} : vector<80x80xf32>, vector<80x128xf32>, vector<80x128xf32> -> vector<80x128xf32>
    %25 = vector.broadcast %23 : vector<80x1xf32> to vector<80x128xf32>
    %26 = arith.addf %24, %25 : vector<80x128xf32>
    %27 = math.tanh %26 : vector<80x128xf32>
    %28 = vector.extract_strided_slice %8 {offsets = [160, 0], sizes = [80, 80], strides = [1, 1]} : vector<240x80xf32> to vector<80x80xf32>
    %29 = vector.extract_strided_slice %7 {offsets = [240, 0], sizes = [80, 1], strides = [1, 1]} : vector<320x1xf32> to vector<80x1xf32>
    %cst_19 = arith.constant dense<0.000000e+00> : vector<80x128xf32>
    %30 = tpu.matmul %28, %27, %cst_19 {dimension_numbers = #tpu.dot_dimension_numbers<[1], [0], [0], [1], [0, 0, 1, 1], [], []>} : vector<80x80xf32>, vector<80x128xf32>, vector<80x128xf32> -> vector<80x128xf32>
    %31 = vector.broadcast %29 : vector<80x1xf32> to vector<80x128xf32>
    %32 = arith.addf %30, %31 : vector<80x128xf32>
    %33 = math.tanh %32 : vector<80x128xf32>
    %34 = vector.extract_strided_slice %6 {offsets = [0, 0], sizes = [80, 128], strides = [1, 1]} : vector<81x128xf32> to vector<80x128xf32>
    %35 = arith.mulf %34, %33 : vector<80x128xf32>
    %cst_20 = arith.constant dense<0.000000e+00> : vector<128xf32>
    %36 = vector.multi_reduction <add>, %35, %cst_20 [0] : vector<80x128xf32> to vector<128xf32>
    %37 = vector.shape_cast %36 : vector<128xf32> to vector<1x128xf32>
    %38 = vector.extract_strided_slice %6 {offsets = [80, 0], sizes = [1, 128], strides = [1, 1]} : vector<81x128xf32> to vector<1x128xf32>
    %39 = arith.addf %37, %38 : vector<1x128xf32>
    %c0_21 = arith.constant 0 : index
    %c0_22 = arith.constant 0 : index
    %40 = vector.load %arg9[%c0_21, %c0_22] : memref<1x128xf32, #tpu.memory_space<vmem>>, vector<1x128xf32>
    tpu.vector_store %arg9[%c0_21, %c0_22], %39 {strides = array<i32>} : memref<1x128xf32, #tpu.memory_space<vmem>>, vector<1x128xf32>,
    return
  }
  func.func @transform_0(%arg0: i32) -> (i32, i32) {
    %c0_i32 = arith.constant 0 : i32
    %c0_i32_0 = arith.constant 0 : i32
    return %arg0, %c0_i32 : i32, i32
  }
  func.func @transform_1(%arg0: i32) -> (i32, i32) {
    %c0_i32 = arith.constant 0 : i32
    %c0_i32_0 = arith.constant 0 : i32
    return %arg0, %c0_i32 : i32, i32
  }
  func.func @transform_2(%arg0: i32) -> (i32, i32) {
    %c0_i32 = arith.constant 0 : i32
    %c0_i32_0 = arith.constant 0 : i32
    return %arg0, %c0_i32 : i32, i32
  }
  func.func @transform_3(%arg0: i32) -> (i32, i32) {
    %c0_i32 = arith.constant 0 : i32
    %c0_i32_0 = arith.constant 0 : i32
    %c0_i32_1 = arith.constant 0 : i32
    return %c0_i32, %c0_i32_0 : i32, i32
  }
  func.func @transform_4(%arg0: i32) -> (i32, i32) {
    %c0_i32 = arith.constant 0 : i32
    %c0_i32_0 = arith.constant 0 : i32
    %c0_i32_1 = arith.constant 0 : i32
    return %c0_i32, %c0_i32_0 : i32, i32
  }
  func.func @transform_5(%arg0: i32) -> (i32, i32) {
    %c0_i32 = arith.constant 0 : i32
    %c0_i32_0 = arith.constant 0 : i32
    %c0_i32_1 = arith.constant 0 : i32
    return %c0_i32, %c0_i32_0 : i32, i32
  }
  func.func @transform_6(%arg0: i32) -> (i32, i32) {
    %c0_i32 = arith.constant 0 : i32
    %c0_i32_0 = arith.constant 0 : i32
    %c0_i32_1 = arith.constant 0 : i32
    return %c0_i32, %c0_i32_0 : i32, i32
  }
  func.func @transform_7(%arg0: i32) -> (i32, i32) {
    %c0_i32 = arith.constant 0 : i32
    %c0_i32_0 = arith.constant 0 : i32
    %c0_i32_1 = arith.constant 0 : i32
    return %c0_i32, %c0_i32_0 : i32, i32
  }
  func.func @transform_8(%arg0: i32) -> (i32, i32) {
    %c0_i32 = arith.constant 0 : i32
    %c0_i32_0 = arith.constant 0 : i32
    return %c0_i32, %arg0 : i32, i32
  }
}

</mosaic_0001>

<llo_original>
// kernel: tpu_custom_call.1
$region0: #{tpu_custom_call.1}
  #allocation0 [shape = 'u32[]', space=smem, size = 0x4, offset = 0x4, fixed_abs, tag = 'smem constant byte address 0x4 - core index']
  #allocation1 [shape = 'u32[144,128]{1,0:T(1,128)}', space=vmem, size = 0x12000, scoped, tag = 'internal scratch']
  %s0 = inlined_call_operand.vmem [shape: f32[192,16], index: 0, kind: input, shape index: {}]
  %s1 = inlined_call_operand.vmem [shape: f32[192,24], index: 1, kind: input, shape index: {}]
  %s2 = inlined_call_operand.vmem [shape: f32[192,2], index: 2, kind: input, shape index: {}]
  %s3 = inlined_call_operand.vmem [shape: f32[81,16], index: 3, kind: input, shape index: {}]
  %s4 = inlined_call_operand.vmem [shape: f32[81,24], index: 4, kind: input, shape index: {}]
  %s5 = inlined_call_operand.vmem [shape: f32[80,2], index: 5, kind: input, shape index: {}]
  %s6 = inlined_call_operand.vmem [shape: f32[240,80], index: 6, kind: input, shape index: {}]
  %s7 = inlined_call_operand.vmem [shape: f32[320,1], index: 7, kind: input, shape index: {}]
  %s8 = inlined_call_operand.hbm [shape: f32[1,192], index: 8, kind: output, shape index: {}]
  %s9 = sld [smem:[#allocation0]]
  $region65: #{tpu_custom_call.1} parent=0
    _
  %s11 = ssub.s32 1, %s9
  %s12 = scalar_select 0, %s11, %s9
  $region1: #{tpu_custom_call.1} parent=0
    #allocation2 [shape = 'u8[1024]{0}', space=vmem, size = 0x400, scoped, tag = 'output window, operand 0']
    #allocation3 [shape = 's32[2]{0}', space=sflag, size = 0x8, scoped, tag = 'scoped memory for tpu_custom_call.1']
    %13 = vsyncpa [#allocation3], 0
    %s14 = scalar_lea.sflag [#allocation3], 1
    %15 = vsyncpa %s14, 0
    loop: start=0, step=1, limit=4
    $region2: #{tpu_custom_call.1} parent=1 // loop_pre_header
      _
    $region3: #{tpu_custom_call.1} parent=1 // loop_header
      %s17 = sphi 0, %s21
      %p18 = scmp.ge.s32.totalorder %s17, 4
      %s27 = sphi 0, %s29
      %s30 = sphi 0, %s27
      %s31 = sphi 0, %s30
      %s47 = sphi 0, %s31
      %s53 = sphi 0, %s55
      %s56 = sphi 0, %s53
      %s57 = sphi 0, %s56
      %s73 = sphi 0, %s57
      %s79 = sphi 0, %s81
      %s82 = sphi 0, %s79
      %s83 = sphi 0, %s82
      %s99 = sphi 0, %s83
      %s103 = sphi 0, %s103
      %s105 = sphi 0, %s103
      %s106 = sphi 0, %s105
      %s120 = sphi 0, %s106
      %s124 = sphi 0, %s124
      %s126 = sphi 0, %s124
      %s127 = sphi 0, %s126
      %s141 = sphi 0, %s127
      %s145 = sphi 0, %s145
      %s147 = sphi 0, %s145
      %s148 = sphi 0, %s147
      %s162 = sphi 0, %s148
      %s166 = sphi 0, %s166
      %s168 = sphi 0, %s166
      %s169 = sphi 0, %s168
      %s183 = sphi 0, %s169
      %s187 = sphi 0, %s187
      %s189 = sphi 0, %s187
      %s190 = sphi 0, %s189
      %s204 = sphi 0, %s190
      %s210 = sphi 0, %s212
      %s213 = sphi 0, %s210
      %s214 = sphi 0, %s213
      %s230 = sphi 0, %s214
    $region4: #{tpu_custom_call.1} parent=1 // loop_header_branch
      %20 = sbr.rel (%p18) target = $region8
    $region5: #{tpu_custom_call.1} parent=1 // loop_body
      %s22 = ssub.s32 %s17, 1
      %s23 = ssub.s32 %s17, 2
      %s24 = sadd.s32 %s17, 1
      %s25 = ssub.s32 %s17, %s24
      %p26 = scmp.eq.s32.totalorder %s25, 0
      %s28 = sadd.s32 %s27, 1
      %s29 = scalar_select %p26, %s27, %s28
      %p32 = pneg %p26
      %p33 = scmp.eq.s32.totalorder %s17, 1
      %p34 = por %p32, %p33
      %p35 = scmp.ne.s32.totalorder %s27, %s30
      %p36 = scmp.eq.s32.totalorder %s17, 0
      %p37 = por %p35, %p36
      %p38 = scmp.ne.s32.totalorder %s27, %s30
      %p39 = scmp.eq.s32.totalorder %s22, 1
      %p40 = por %p38, %p39
      %p41 = scmp.ne.s32.totalorder %s30, %s31
      %p42 = scmp.eq.s32.totalorder %s22, 0
      %p43 = por %p41, %p42
      %p44 = scmp.ne.s32.totalorder %s30, %s31
      %p45 = scmp.eq.s32.totalorder %s23, 1
      %p46 = por %p44, %p45
      %p48 = scmp.ne.s32.totalorder %s31, %s47
      %p49 = scmp.eq.s32.totalorder %s23, 0
      %p50 = por %p48, %p49
      %s51 = ssub.s32 %s17, %s24
      %p52 = scmp.eq.s32.totalorder %s51, 0
      %s54 = sadd.s32 %s53, 1
      %s55 = scalar_select %p52, %s53, %s54
      %p58 = pneg %p52
      %p59 = scmp.eq.s32.totalorder %s17, 1
      %p60 = por %p58, %p59
      %p61 = scmp.ne.s32.totalorder %s53, %s56
      %p62 = scmp.eq.s32.totalorder %s17, 0
      %p63 = por %p61, %p62
      %p64 = scmp.ne.s32.totalorder %s53, %s56
      %p65 = scmp.eq.s32.totalorder %s22, 1
      %p66 = por %p64, %p65
      %p67 = scmp.ne.s32.totalorder %s56, %s57
      %p68 = scmp.eq.s32.totalorder %s22, 0
      %p69 = por %p67, %p68
      %p70 = scmp.ne.s32.totalorder %s56, %s57
      %p71 = scmp.eq.s32.totalorder %s23, 1
      %p72 = por %p70, %p71
      %p74 = scmp.ne.s32.totalorder %s57, %s73
      %p75 = scmp.eq.s32.totalorder %s23, 0
      %p76 = por %p74, %p75
      %s77 = ssub.s32 %s17, %s24
      %p78 = scmp.eq.s32.totalorder %s77, 0
      %s80 = sadd.s32 %s79, 1
      %s81 = scalar_select %p78, %s79, %s80
      %p84 = pneg %p78
      %p85 = scmp.eq.s32.totalorder %s17, 1
      %p86 = por %p84, %p85
      %p87 = scmp.ne.s32.totalorder %s79, %s82
      %p88 = scmp.eq.s32.totalorder %s17, 0
      %p89 = por %p87, %p88
      %p90 = scmp.ne.s32.totalorder %s79, %s82
      %p91 = scmp.eq.s32.totalorder %s22, 1
      %p92 = por %p90, %p91
      %p93 = scmp.ne.s32.totalorder %s82, %s83
      %p94 = scmp.eq.s32.totalorder %s22, 0
      %p95 = por %p93, %p94
      %p96 = scmp.ne.s32.totalorder %s82, %s83
      %p97 = scmp.eq.s32.totalorder %s23, 1
      %p98 = por %p96, %p97
      %p100 = scmp.ne.s32.totalorder %s83, %s99
      %p101 = scmp.eq.s32.totalorder %s23, 0
      %p102 = por %p100, %p101
      %s104 = sadd.s32 %s103, 1
      %p107 = scmp.eq.s32.totalorder %s17, 1
      %p108 = scmp.ne.s32.totalorder %s103, %s105
      %p109 = scmp.eq.s32.totalorder %s17, 0
      %p110 = por %p108, %p109
      %p111 = scmp.ne.s32.totalorder %s103, %s105
      %p112 = scmp.eq.s32.totalorder %s22, 1
      %p113 = por %p111, %p112
      %p114 = scmp.ne.s32.totalorder %s105, %s106
      %p115 = scmp.eq.s32.totalorder %s22, 0
      %p116 = por %p114, %p115
      %p117 = scmp.ne.s32.totalorder %s105, %s106
      %p118 = scmp.eq.s32.totalorder %s23, 1
      %p119 = por %p117, %p118
      %p121 = scmp.ne.s32.totalorder %s106, %s120
      %p122 = scmp.eq.s32.totalorder %s23, 0
      %p123 = por %p121, %p122
      %s125 = sadd.s32 %s124, 1
      %p128 = scmp.eq.s32.totalorder %s17, 1
      %p129 = scmp.ne.s32.totalorder %s124, %s126
      %p130 = scmp.eq.s32.totalorder %s17, 0
      %p131 = por %p129, %p130
      %p132 = scmp.ne.s32.totalorder %s124, %s126
      %p133 = scmp.eq.s32.totalorder %s22, 1
      %p134 = por %p132, %p133
      %p135 = scmp.ne.s32.totalorder %s126, %s127
      %p136 = scmp.eq.s32.totalorder %s22, 0
      %p137 = por %p135, %p136
      %p138 = scmp.ne.s32.totalorder %s126, %s127
      %p139 = scmp.eq.s32.totalorder %s23, 1
      %p140 = por %p138, %p139
      %p142 = scmp.ne.s32.totalorder %s127, %s141
      %p143 = scmp.eq.s32.totalorder %s23, 0
      %p144 = por %p142, %p143
      %s146 = sadd.s32 %s145, 1
      %p149 = scmp.eq.s32.totalorder %s17, 1
      %p150 = scmp.ne.s32.totalorder %s145, %s147
      %p151 = scmp.eq.s32.totalorder %s17, 0
      %p152 = por %p150, %p151
      %p153 = scmp.ne.s32.totalorder %s145, %s147
      %p154 = scmp.eq.s32.totalorder %s22, 1
      %p155 = por %p153, %p154
      %p156 = scmp.ne.s32.totalorder %s147, %s148
      %p157 = scmp.eq.s32.totalorder %s22, 0
      %p158 = por %p156, %p157
      %p159 = scmp.ne.s32.totalorder %s147, %s148
      %p160 = scmp.eq.s32.totalorder %s23, 1
      %p161 = por %p159, %p160
      %p163 = scmp.ne.s32.totalorder %s148, %s162
      %p164 = scmp.eq.s32.totalorder %s23, 0
      %p165 = por %p163, %p164
      %s167 = sadd.s32 %s166, 1
      %p170 = scmp.eq.s32.totalorder %s17, 1
      %p171 = scmp.ne.s32.totalorder %s166, %s168
      %p172 = scmp.eq.s32.totalorder %s17, 0
      %p173 = por %p171, %p172
      %p174 = scmp.ne.s32.totalorder %s166, %s168
      %p175 = scmp.eq.s32.totalorder %s22, 1
      %p176 = por %p174, %p175
      %p177 = scmp.ne.s32.totalorder %s168, %s169
      %p178 = scmp.eq.s32.totalorder %s22, 0
      %p179 = por %p177, %p178
      %p180 = scmp.ne.s32.totalorder %s168, %s169
      %p181 = scmp.eq.s32.totalorder %s23, 1
      %p182 = por %p180, %p181
      %p184 = scmp.ne.s32.totalorder %s169, %s183
      %p185 = scmp.eq.s32.totalorder %s23, 0
      %p186 = por %p184, %p185
      %s188 = sadd.s32 %s187, 1
      %p191 = scmp.eq.s32.totalorder %s17, 1
      %p192 = scmp.ne.s32.totalorder %s187, %s189
      %p193 = scmp.eq.s32.totalorder %s17, 0
      %p194 = por %p192, %p193
      %p195 = scmp.ne.s32.totalorder %s187, %s189
      %p196 = scmp.eq.s32.totalorder %s22, 1
      %p197 = por %p195, %p196
      %p198 = scmp.ne.s32.totalorder %s189, %s190
      %p199 = scmp.eq.s32.totalorder %s22, 0
      %p200 = por %p198, %p199
      %p201 = scmp.ne.s32.totalorder %s189, %s190
      %p202 = scmp.eq.s32.totalorder %s23, 1
      %p203 = por %p201, %p202
      %p205 = scmp.ne.s32.totalorder %s190, %s204
      %p206 = scmp.eq.s32.totalorder %s23, 0
      %p207 = por %p205, %p206
      %s208 = ssub.s32 %s17, %s24
      %p209 = scmp.eq.s32.totalorder %s208, 0
      %s211 = sadd.s32 %s210, 1
      %s212 = scalar_select %p209, %s210, %s211
      %p215 = pneg %p209
      %p216 = scmp.eq.s32.totalorder %s17, 1
      %p217 = por %p215, %p216
      %p218 = scmp.ne.s32.totalorder %s210, %s213
      %p219 = scmp.eq.s32.totalorder %s17, 0
      %p220 = por %p218, %p219
      %p221 = scmp.ne.s32.totalorder %s210, %s213
      %p222 = scmp.eq.s32.totalorder %s22, 1
      %p223 = por %p221, %p222
      %p224 = scmp.ne.s32.totalorder %s213, %s214
      %p225 = scmp.eq.s32.totalorder %s22, 0
      %p226 = por %p224, %p225
      %p227 = scmp.ne.s32.totalorder %s213, %s214
      %p228 = scmp.eq.s32.totalorder %s23, 1
      %p229 = por %p227, %p228
      %p231 = scmp.ne.s32.totalorder %s214, %s230
      %p232 = scmp.eq.s32.totalorder %s23, 0
      %p233 = por %p231, %p232
      %p234 = scmp.le.s32.totalorder 1, %s17
      %p235 = scmp.lt.s32.totalorder %s17, 3
      %p236 = pnand %p234, %p235
      %p237 = pneg %p236
      // Predicated region
      $region9: #{tpu_custom_call.1} parent=5 // pred_check
        _
      $region10: #{tpu_custom_call.1} parent=5 // pred_check_branch
        %239 = sbr.rel (%p236) target = $region12
      $region11: #{tpu_custom_call.1} parent=5 // pred_region
        %s240 = ssub.s32 %s17, 1
        // Predicated region
        $region13: #{tpu_custom_call.1} parent=11 // pred_check
          %p241 = pneg %p116
        $region14: #{tpu_custom_call.1} parent=11 // pred_check_branch
          %243 = sbr.rel (%p241) target = $region16
        $region15: #{tpu_custom_call.1} parent=11 // pred_region
          _
        $region16: #{tpu_custom_call.1} parent=11 // pred_fallthru
          _
        // Predicated region
        $region17: #{tpu_custom_call.1} parent=11 // pred_check
          %p244 = pneg %p137
        $region18: #{tpu_custom_call.1} parent=11 // pred_check_branch
          %246 = sbr.rel (%p244) target = $region20
        $region19: #{tpu_custom_call.1} parent=11 // pred_region
          _
        $region20: #{tpu_custom_call.1} parent=11 // pred_fallthru
          _
        // Predicated region
        $region21: #{tpu_custom_call.1} parent=11 // pred_check
          %p247 = pneg %p158
        $region22: #{tpu_custom_call.1} parent=11 // pred_check_branch
          %249 = sbr.rel (%p247) target = $region24
        $region23: #{tpu_custom_call.1} parent=11 // pred_region
          _
        $region24: #{tpu_custom_call.1} parent=11 // pred_fallthru
          _
        // Predicated region
        $region25: #{tpu_custom_call.1} parent=11 // pred_check
          %p250 = pneg %p179
        $region26: #{tpu_custom_call.1} parent=11 // pred_check_branch
          %252 = sbr.rel (%p250) target = $region28
        $region27: #{tpu_custom_call.1} parent=11 // pred_region
          _
        $region28: #{tpu_custom_call.1} parent=11 // pred_fallthru
          _
        // Predicated region
        $region29: #{tpu_custom_call.1} parent=11 // pred_check
          %p253 = pneg %p200
        $region30: #{tpu_custom_call.1} parent=11 // pred_check_branch
          %255 = sbr.rel (%p253) target = $region32
        $region31: #{tpu_custom_call.1} parent=11 // pred_region
          _
        $region32: #{tpu_custom_call.1} parent=11 // pred_fallthru
          _
      $region12: #{tpu_custom_call.1} parent=5 // pred_fallthru
        _
      %p256 = scmp.lt.s32.totalorder %s17, 2
      // Predicated region
      $region33: #{tpu_custom_call.1} parent=5 // pred_check
        %p257 = pneg %p256
      $region34: #{tpu_custom_call.1} parent=5 // pred_check_branch
        %259 = sbr.rel (%p257) target = $region36
      $region35: #{tpu_custom_call.1} parent=5 // pred_region
        // Predicated region
        $region37: #{tpu_custom_call.1} parent=35 // pred_check
          %p260 = pneg %p37
        $region38: #{tpu_custom_call.1} parent=35 // pred_check_branch
          %262 = sbr.rel (%p260) target = $region40
        $region39: #{tpu_custom_call.1} parent=35 // pred_region
          %s263 = smul.u32 16, %s17
          %s264 = ssub.s32 24, %s263
          %p265 = scmp.lt.s32.totalorder %s264, 16
          %s266 = scalar_select %p265, %s264, 16
          %s267 = smul.u32 128, %s266
          %p268 = scmp.lt.s32.totalorder %s263, 23
          %s269 = scalar_select %p268, %s263, 23
          %s270 = smul.addr %s269, 8
          %s271 = scalar_lea.vmem %s0, %s270
          %s272 = smul.u32 16, %s17
          %s273 = ssub.s32 24, %s272
          %p274 = scmp.lt.s32.totalorder %s273, 16
          %s275 = scalar_select %p274, %s273, 16
          %s276 = smul.u32 128, %s275
        $region40: #{tpu_custom_call.1} parent=35 // pred_fallthru
          _
        // Predicated region
        $region41: #{tpu_custom_call.1} parent=35 // pred_check
          %p277 = pneg %p63
        $region42: #{tpu_custom_call.1} parent=35 // pred_check_branch
          %279 = sbr.rel (%p277) target = $region44
        $region43: #{tpu_custom_call.1} parent=35 // pred_region
          %s280 = smul.u32 16, %s17
          %s281 = ssub.s32 24, %s280
          %p282 = scmp.lt.s32.totalorder %s281, 16
          %s283 = scalar_select %p282, %s281, 16
          %s284 = smul.u32 128, %s283
          %p285 = scmp.lt.s32.totalorder %s280, 23
          %s286 = scalar_select %p285, %s280, 23
          %s287 = smul.addr %s286, 8
          %s288 = scalar_lea.vmem %s1, %s287
          %s289 = smul.u32 16, %s17
          %s290 = ssub.s32 24, %s289
          %p291 = scmp.lt.s32.totalorder %s290, 16
          %s292 = scalar_select %p291, %s290, 16
          %s293 = smul.u32 128, %s292
        $region44: #{tpu_custom_call.1} parent=35 // pred_fallthru
          _
        // Predicated region
        $region45: #{tpu_custom_call.1} parent=35 // pred_check
          %p294 = pneg %p89
        $region46: #{tpu_custom_call.1} parent=35 // pred_check_branch
          %296 = sbr.rel (%p294) target = $region48
        $region47: #{tpu_custom_call.1} parent=35 // pred_region
          %s297 = smul.u32 16, %s17
          %s298 = ssub.s32 24, %s297
          %p299 = scmp.lt.s32.totalorder %s298, 16
          %s300 = scalar_select %p299, %s298, 16
          %s301 = smul.u32 128, %s300
          %p302 = scmp.lt.s32.totalorder %s297, 23
          %s303 = scalar_select %p302, %s297, 23
          %s304 = smul.addr %s303, 8
          %s305 = scalar_lea.vmem %s2, %s304
          %s306 = smul.u32 16, %s17
          %s307 = ssub.s32 24, %s306
          %p308 = scmp.lt.s32.totalorder %s307, 16
          %s309 = scalar_select %p308, %s307, 16
          %s310 = smul.u32 128, %s309
        $region48: #{tpu_custom_call.1} parent=35 // pred_fallthru
          _
      $region36: #{tpu_custom_call.1} parent=5 // pred_fallthru
        _
      %p311 = scmp.le.s32.totalorder 1, %s17
      %p312 = scmp.lt.s32.totalorder %s17, 3
      %p313 = pnand %p311, %p312
      %p314 = pneg %p313
      // Predicated region
      $region49: #{tpu_custom_call.1} parent=5 // pred_check
        _
      $region50: #{tpu_custom_call.1} parent=5 // pred_check_branch
        %316 = sbr.rel (%p313) target = $region52
      $region51: #{tpu_custom_call.1} parent=5 // pred_region
        %s317 = ssub.s32 %s17, 1
        %s318 = smul.u32 16, %s22
        %s319 = ssub.s32 24, %s318
        %p320 = scmp.lt.s32.totalorder %s319, 16
        %s321 = scalar_select %p320, %s319, 16
        %s322 = smul.u32 128, %s321
        %p323 = scmp.lt.s32.totalorder %s318, 23
        %s324 = scalar_select %p323, %s318, 23
        %s325 = smul.addr %s324, 8
        %s326 = scalar_lea.vmem %s0, %s325
        %p327 = pneg %p43
        %p328 = pneg %p40
        %s329 = smul.u32 16, %s22
        %s330 = ssub.s32 24, %s329
        %p331 = scmp.lt.s32.totalorder %s330, 16
        %s332 = scalar_select %p331, %s330, 16
        %s333 = smul.u32 128, %s332
        %p334 = scmp.lt.s32.totalorder %s329, 23
        %s335 = scalar_select %p334, %s329, 23
        %s336 = smul.addr %s335, 8
        %s337 = scalar_lea.vmem %s1, %s336
        %p338 = pneg %p69
        %p339 = pneg %p66
        %s340 = smul.u32 16, %s22
        %s341 = ssub.s32 24, %s340
        %p342 = scmp.lt.s32.totalorder %s341, 16
        %s343 = scalar_select %p342, %s341, 16
        %s344 = smul.u32 128, %s343
        %p345 = scmp.lt.s32.totalorder %s340, 23
        %s346 = scalar_select %p345, %s340, 23
        %s347 = smul.addr %s346, 8
        %s348 = scalar_lea.vmem %s2, %s347
        %p349 = pneg %p95
        %p350 = pneg %p92
        %p351 = pneg %p116
        %p352 = pneg %p113
        %p353 = pneg %p137
        %p354 = pneg %p134
        %p355 = pneg %p158
        %p356 = pneg %p155
        %p357 = pneg %p179
        %p358 = pneg %p176
        %p359 = pneg %p200
        %p360 = pneg %p197
        %p361 = pneg %p226
        %p362 = pneg %p223
        %s363 = sand.u32 %s213, 1
        %s364 = scalar_lea.sflag [#allocation3], %s363
        %s365 = sand.u32 %s213, 1
        %s366 = scalar_lea.vmem [#allocation2], %s365
        %s367 = smul.u32 16, %s22
        %s368 = ssub.s32 24, %s367
        %p369 = scmp.lt.s32.totalorder %s368, 16
        %s370 = scalar_select %p369, %s368, 16
        %s371 = smul.u32 128, %s370
        %p372 = scmp.lt.s32.totalorder %s367, 23
        %s373 = scalar_select %p372, %s367, 23
        %s374 = smul.addr %s373, 8
        %s375 = scalar_lea.vmem %s0, %s374
        %s376 = smul.u32 16, %s22
        %s377 = ssub.s32 24, %s376
        %p378 = scmp.lt.s32.totalorder %s377, 16
        %s379 = scalar_select %p378, %s377, 16
        %s380 = smul.u32 128, %s379
        %s381 = smul.u32 16, %s22
        %s382 = ssub.s32 24, %s381
        %p383 = scmp.lt.s32.totalorder %s382, 16
        %s384 = scalar_select %p383, %s382, 16
        %s385 = smul.u32 128, %s384
        %p386 = scmp.lt.s32.totalorder %s381, 23
        %s387 = scalar_select %p386, %s381, 23
        %s388 = smul.addr %s387, 8
        %s389 = scalar_lea.vmem %s1, %s388
        %s390 = smul.u32 16, %s22
        %s391 = ssub.s32 24, %s390
        %p392 = scmp.lt.s32.totalorder %s391, 16
        %s393 = scalar_select %p392, %s391, 16
        %s394 = smul.u32 128, %s393
        %s395 = smul.u32 16, %s22
        %s396 = ssub.s32 24, %s395
        %p397 = scmp.lt.s32.totalorder %s396, 16
        %s398 = scalar_select %p397, %s396, 16
        %s399 = smul.u32 128, %s398
        %p400 = scmp.lt.s32.totalorder %s395, 23
        %s401 = scalar_select %p400, %s395, 23
        %s402 = smul.addr %s401, 8
        %s403 = scalar_lea.vmem %s2, %s402
        %s404 = smul.u32 16, %s22
        %s405 = ssub.s32 24, %s404
        %p406 = scmp.lt.s32.totalorder %s405, 16
        %s407 = scalar_select %p406, %s405, 16
        %s408 = smul.u32 128, %s407
        %v409 = vld [vmem:[%s3] sm:$0xff]
        %v410 = vld [vmem:[%s3 + $0x8] sm:$0xff]
        %v411 = vld [vmem:[%s3 + $0x10] sm:$0xff]
        %v412 = vld [vmem:[%s3 + $0x18] sm:$0xff]
        %v413 = vld [vmem:[%s3 + $0x20] sm:$0xff]
        %v414 = vld [vmem:[%s3 + $0x28] sm:$0xff]
        %v415 = vld [vmem:[%s3 + $0x30] sm:$0xff]
        %v416 = vld [vmem:[%s3 + $0x38] sm:$0xff]
        %v417 = vld [vmem:[%s3 + $0x40] sm:$0xff]
        %v418 = vld [vmem:[%s3 + $0x48] sm:$0xff]
        %v419 = vld [vmem:[%s3 + $0x50] sm:$0x1]
        %v420 = vld [vmem:[%s375] sm:$0xff]
        %v421 = vld [vmem:[%s375 + $0x8] sm:$0xff]
        %v422 = vld [vmem:[%s375 + $0x10] sm:$0xff]
        %v423 = vld [vmem:[%s375 + $0x18] sm:$0xff]
        %v424 = vld [vmem:[%s375 + $0x20] sm:$0xff]
        %v425 = vld [vmem:[%s375 + $0x28] sm:$0xff]
        %v426 = vld [vmem:[%s375 + $0x30] sm:$0xff]
        %v427 = vld [vmem:[%s375 + $0x38] sm:$0xff]
        %v428 = vld [vmem:[%s375 + $0x40] sm:$0xff]
        %v429 = vld [vmem:[%s375 + $0x48] sm:$0xff]
        %v430 = vld [vmem:[%s375 + $0x50] sm:$0xff]
        %v431 = vld [vmem:[%s375 + $0x58] sm:$0xff]
        %v432 = vld [vmem:[%s375 + $0x60] sm:$0xff]
        %v433 = vld [vmem:[%s375 + $0x68] sm:$0xff]
        %v434 = vld [vmem:[%s375 + $0x70] sm:$0xff]
        %v435 = vld [vmem:[%s375 + $0x78] sm:$0xff]
        %v436 = vld [vmem:[%s4] sm:$0xff]
        %v437 = vld [vmem:[%s4 + $0x8] sm:$0xff]
        %v438 = vld [vmem:[%s4 + $0x10] sm:$0xff]
        %v439 = vld [vmem:[%s4 + $0x18] sm:$0xff]
        %v440 = vld [vmem:[%s4 + $0x20] sm:$0xff]
        %v441 = vld [vmem:[%s4 + $0x28] sm:$0xff]
        %v442 = vld [vmem:[%s4 + $0x30] sm:$0xff]
        %v443 = vld [vmem:[%s4 + $0x38] sm:$0xff]
        %v444 = vld [vmem:[%s4 + $0x40] sm:$0xff]
        %v445 = vld [vmem:[%s4 + $0x48] sm:$0xff]
        %v446 = vld [vmem:[%s4 + $0x50] sm:$0x1]
        %v447 = vld [vmem:[%s389] sm:$0xff]
        %v448 = vld [vmem:[%s389 + $0x8] sm:$0xff]
        %v449 = vld [vmem:[%s389 + $0x10] sm:$0xff]
        %v450 = vld [vmem:[%s389 + $0x18] sm:$0xff]
        %v451 = vld [vmem:[%s389 + $0x20] sm:$0xff]
        %v452 = vld [vmem:[%s389 + $0x28] sm:$0xff]
        %v453 = vld [vmem:[%s389 + $0x30] sm:$0xff]
        %v454 = vld [vmem:[%s389 + $0x38] sm:$0xff]
        %v455 = vld [vmem:[%s389 + $0x40] sm:$0xff]
        %v456 = vld [vmem:[%s389 + $0x48] sm:$0xff]
        %v457 = vld [vmem:[%s389 + $0x50] sm:$0xff]
        %v458 = vld [vmem:[%s389 + $0x58] sm:$0xff]
        %v459 = vld [vmem:[%s389 + $0x60] sm:$0xff]
        %v460 = vld [vmem:[%s389 + $0x68] sm:$0xff]
        %v461 = vld [vmem:[%s389 + $0x70] sm:$0xff]
        %v462 = vld [vmem:[%s389 + $0x78] sm:$0xff]
        %vm463 = vcmask 195584
        %v465 = vsel %vm463, %v436, 0
        %v468 = vsel %vm463, %v437, 0
        %v471 = vsel %vm463, %v438, 0
        %v474 = vsel %vm463, %v439, 0
        %v477 = vsel %vm463, %v440, 0
        %v480 = vsel %vm463, %v441, 0
        %v483 = vsel %vm463, %v442, 0
        %v486 = vsel %vm463, %v443, 0
        %v489 = vsel %vm463, %v444, 0
        %v492 = vsel %vm463, %v445, 0
        %v495 = vsel %vm463, %v446, 0
        %v498 = vsel %vm463, %v447, 0
        %v501 = vsel %vm463, %v448, 0
        %v504 = vsel %vm463, %v449, 0
        %v507 = vsel %vm463, %v450, 0
        %v510 = vsel %vm463, %v451, 0
        %v513 = vsel %vm463, %v452, 0
        %v516 = vsel %vm463, %v453, 0
        %v519 = vsel %vm463, %v454, 0
        %v522 = vsel %vm463, %v455, 0
        %v525 = vsel %vm463, %v456, 0
        %v528 = vsel %vm463, %v457, 0
        %v531 = vsel %vm463, %v458, 0
        %v534 = vsel %vm463, %v459, 0
        %v537 = vsel %vm463, %v460, 0
        %v540 = vsel %vm463, %v461, 0
        %v543 = vsel %vm463, %v462, 0
        %545 = vmatprep.subr.mxu0 0.0
        %546 = vmatpush1.xpose.msra.mxu0 %v543
        %547 = vmatprep.subr.mxu0 0.0
        %548 = vmatpush1.xpose.msra.mxu0 %v540
        %549 = vmatprep.subr.mxu0 0.0
        %550 = vmatpush1.xpose.msra.mxu0 %v537
        %551 = vmatprep.subr.mxu0 0.0
        %552 = vmatpush1.xpose.msra.mxu0 %v534
        %553 = vmatprep.subr.mxu0 0.0
        %554 = vmatpush1.xpose.msra.mxu0 %v531
        %555 = vmatprep.subr.mxu0 0.0
        %556 = vmatpush1.xpose.msra.mxu0 %v528
        %557 = vmatprep.subr.mxu0 0.0
        %558 = vmatpush1.xpose.msra.mxu0 %v525
        %559 = vmatprep.subr.mxu0 0.0
        %560 = vmatpush1.xpose.msra.mxu0 %v522
        %561 = vmatprep.subr.mxu0 0.0
        %562 = vmatpush1.xpose.msra.mxu0 %v519
        %563 = vmatprep.subr.mxu0 0.0
        %564 = vmatpush1.xpose.msra.mxu0 %v516
        %565 = vmatprep.subr.mxu0 0.0
        %566 = vmatpush1.xpose.msra.mxu0 %v513
        %567 = vmatprep.subr.mxu0 0.0
        %568 = vmatpush1.xpose.msra.mxu0 %v510
        %569 = vmatprep.subr.mxu0 0.0
        %570 = vmatpush1.xpose.msra.mxu0 %v507
        %571 = vmatprep.subr.mxu0 0.0
        %572 = vmatpush1.xpose.msra.mxu0 %v504
        %573 = vmatprep.subr.mxu0 0.0
        %574 = vmatpush1.xpose.msra.mxu0 %v501
        %575 = vmatprep.subr.mxu0 0.0
        %576 = vmatpush1.xpose.msra.mxu0 %v498
        %577 = vmatprep.subr.mxu0 0.0
        %578 = vmatpush2.xpose.msra.mxu0 0.0
        %579 = vmatprep.subr.mxu0 0.0
        %580 = vmatpush2.xpose.msra.mxu0 0.0
        %581 = vmatprep.subr.mxu0 0.0
        %582 = vmatpush2.xpose.msra.mxu0 0.0
        %583 = vmatprep.subr.mxu0 0.0
        %584 = vmatpush2.xpose.msra.mxu0 0.0
        %585 = vmatprep.subr.mxu0 0.0
        %586 = vmatpush2.xpose.msra.mxu0 0.0
        %587 = vmatprep.subr.mxu0 0.0
        %588 = vmatpush2.xpose.msra.mxu0 0.0
        %589 = vmatprep.subr.mxu0 0.0
        %590 = vmatpush2.xpose.msra.mxu0 0.0
        %591 = vmatprep.subr.mxu0 0.0
        %592 = vmatpush2.xpose.msra.mxu0 0.0
        %593 = vmatprep.subr.mxu0 0.0
        %594 = vmatpush2.xpose.msra.mxu0 0.0
        %595 = vmatprep.subr.mxu0 0.0
        %596 = vmatpush2.xpose.msra.mxu0 0.0
        %597 = vmatprep.subr.mxu0 0.0
        %598 = vmatpush2.xpose.msra.mxu0 0.0
        %599 = vmatprep.subr.mxu0 0.0
        %600 = vmatpush2.xpose.msra.mxu0 0.0
        %601 = vmatprep.subr.mxu0 0.0
        %602 = vmatpush2.xpose.msra.mxu0 0.0
        %603 = vmatprep.subr.mxu0 0.0
        %604 = vmatpush2.xpose.msra.mxu0 0.0
        %605 = vmatprep.subr.mxu0 0.0
        %606 = vmatpush2.xpose.msra.mxu0 0.0
        %607 = vmatprep.subr.mxu0 0.0
        %608 = vmatpush2.xpose.msra.mxu0 0.0
        %609 = vmatprep.mubr.f32.mxu0 0.0
        %610 = vmatmul.mubr.f32.gmra.mxu0 %v465
        %v611 = vpop.f32.mrf.mxu0
        %v612 = vadd.f32 0.0, %v611
        %v613 = vpop.f32.mrf.mxu0
        %614 = vmatprep.mubr.f32.mxu0 0.0
        %615 = vmatmul.mubr.f32.gmra.mxu0 %v468
        %v616 = vpop.f32.mrf.mxu0
        %v617 = vadd.f32 0.0, %v616
        %v618 = vpop.f32.mrf.mxu0
        %619 = vmatprep.mubr.f32.mxu0 0.0
        %620 = vmatmul.mubr.f32.gmra.mxu0 %v471
        %v621 = vpop.f32.mrf.mxu0
        %v622 = vadd.f32 0.0, %v621
        %v623 = vpop.f32.mrf.mxu0
        %624 = vmatprep.mubr.f32.mxu0 0.0
        %625 = vmatmul.mubr.f32.gmra.mxu0 %v474
        %v626 = vpop.f32.mrf.mxu0
        %v627 = vadd.f32 0.0, %v626
        %v628 = vpop.f32.mrf.mxu0
        %629 = vmatprep.mubr.f32.mxu0 0.0
        %630 = vmatmul.mubr.f32.gmra.mxu0 %v477
        %v631 = vpop.f32.mrf.mxu0
        %v632 = vadd.f32 0.0, %v631
        %v633 = vpop.f32.mrf.mxu0
        %634 = vmatprep.mubr.f32.mxu0 0.0
        %635 = vmatmul.mubr.f32.gmra.mxu0 %v480
        %v636 = vpop.f32.mrf.mxu0
        %v637 = vadd.f32 0.0, %v636
        %v638 = vpop.f32.mrf.mxu0
        %639 = vmatprep.mubr.f32.mxu0 0.0
        %640 = vmatmul.mubr.f32.gmra.mxu0 %v483
        %v641 = vpop.f32.mrf.mxu0
        %v642 = vadd.f32 0.0, %v641
        %v643 = vpop.f32.mrf.mxu0
        %644 = vmatprep.mubr.f32.mxu0 0.0
        %645 = vmatmul.mubr.f32.gmra.mxu0 %v486
        %v646 = vpop.f32.mrf.mxu0
        %v647 = vadd.f32 0.0, %v646
        %v648 = vpop.f32.mrf.mxu0
        %649 = vmatprep.mubr.f32.mxu0 0.0
        %650 = vmatmul.mubr.f32.gmra.mxu0 %v489
        %v651 = vpop.f32.mrf.mxu0
        %v652 = vadd.f32 0.0, %v651
        %v653 = vpop.f32.mrf.mxu0
        %654 = vmatprep.mubr.f32.mxu0 0.0
        %655 = vmatmul.mubr.f32.gmra.mxu0 %v492
        %v656 = vpop.f32.mrf.mxu0
        %v657 = vadd.f32 0.0, %v656
        %v658 = vpop.f32.mrf.mxu0
        %659 = vmatprep.mubr.f32.mxu0 0.0
        %660 = vmatmul.mubr.f32.gmra.mxu0 %v495
        %v661 = vpop.f32.mrf.mxu0
        %v662 = vadd.f32 0.0, %v661
        %v663 = vpop.f32.mrf.mxu0
        %664 = vdwg.mxu0
        %vm665 = vcmask 130048
        %v667 = vsel %vm665, %v409, 0
        %v670 = vsel %vm665, %v410, 0
        %v673 = vsel %vm665, %v411, 0
        %v676 = vsel %vm665, %v412, 0
        %v679 = vsel %vm665, %v413, 0
        %v682 = vsel %vm665, %v414, 0
        %v685 = vsel %vm665, %v415, 0
        %v688 = vsel %vm665, %v416, 0
        %v691 = vsel %vm665, %v417, 0
        %v694 = vsel %vm665, %v418, 0
        %v697 = vsel %vm665, %v419, 0
        %v700 = vsel %vm665, %v420, 0
        %v703 = vsel %vm665, %v421, 0
        %v706 = vsel %vm665, %v422, 0
        %v709 = vsel %vm665, %v423, 0
        %v712 = vsel %vm665, %v424, 0
        %v715 = vsel %vm665, %v425, 0
        %v718 = vsel %vm665, %v426, 0
        %v721 = vsel %vm665, %v427, 0
        %v724 = vsel %vm665, %v428, 0
        %v727 = vsel %vm665, %v429, 0
        %v730 = vsel %vm665, %v430, 0
        %v733 = vsel %vm665, %v431, 0
        %v736 = vsel %vm665, %v432, 0
        %v739 = vsel %vm665, %v433, 0
        %v742 = vsel %vm665, %v434, 0
        %v745 = vsel %vm665, %v435, 0
        %747 = vmatprep.subr.mxu0 0.0
        %748 = vmatpush1.xpose.msra.mxu0 %v745
        %749 = vmatprep.subr.mxu0 0.0
        %750 = vmatpush1.xpose.msra.mxu0 %v742
        %751 = vmatprep.subr.mxu0 0.0
        %752 = vmatpush1.xpose.msra.mxu0 %v739
        %753 = vmatprep.subr.mxu0 0.0
        %754 = vmatpush1.xpose.msra.mxu0 %v736
        %755 = vmatprep.subr.mxu0 0.0
        %756 = vmatpush1.xpose.msra.mxu0 %v733
        %757 = vmatprep.subr.mxu0 0.0
        %758 = vmatpush1.xpose.msra.mxu0 %v730
        %759 = vmatprep.subr.mxu0 0.0
        %760 = vmatpush1.xpose.msra.mxu0 %v727
        %761 = vmatprep.subr.mxu0 0.0
        %762 = vmatpush1.xpose.msra.mxu0 %v724
        %763 = vmatprep.subr.mxu0 0.0
        %764 = vmatpush1.xpose.msra.mxu0 %v721
        %765 = vmatprep.subr.mxu0 0.0
        %766 = vmatpush1.xpose.msra.mxu0 %v718
        %767 = vmatprep.subr.mxu0 0.0
        %768 = vmatpush1.xpose.msra.mxu0 %v715
        %769 = vmatprep.subr.mxu0 0.0
        %770 = vmatpush1.xpose.msra.mxu0 %v712
        %771 = vmatprep.subr.mxu0 0.0
        %772 = vmatpush1.xpose.msra.mxu0 %v709
        %773 = vmatprep.subr.mxu0 0.0
        %774 = vmatpush1.xpose.msra.mxu0 %v706
        %775 = vmatprep.subr.mxu0 0.0
        %776 = vmatpush1.xpose.msra.mxu0 %v703
        %777 = vmatprep.subr.mxu0 0.0
        %778 = vmatpush1.xpose.msra.mxu0 %v700
        %779 = vmatprep.subr.mxu0 0.0
        %780 = vmatpush2.xpose.msra.mxu0 0.0
        %781 = vmatprep.subr.mxu0 0.0
        %782 = vmatpush2.xpose.msra.mxu0 0.0
        %783 = vmatprep.subr.mxu0 0.0
        %784 = vmatpush2.xpose.msra.mxu0 0.0
        %785 = vmatprep.subr.mxu0 0.0
        %786 = vmatpush2.xpose.msra.mxu0 0.0
        %787 = vmatprep.subr.mxu0 0.0
        %788 = vmatpush2.xpose.msra.mxu0 0.0
        %789 = vmatprep.subr.mxu0 0.0
        %790 = vmatpush2.xpose.msra.mxu0 0.0
        %791 = vmatprep.subr.mxu0 0.0
        %792 = vmatpush2.xpose.msra.mxu0 0.0
        %793 = vmatprep.subr.mxu0 0.0
        %794 = vmatpush2.xpose.msra.mxu0 0.0
        %795 = vmatprep.subr.mxu0 0.0
        %796 = vmatpush2.xpose.msra.mxu0 0.0
        %797 = vmatprep.subr.mxu0 0.0
        %798 = vmatpush2.xpose.msra.mxu0 0.0
        %799 = vmatprep.subr.mxu0 0.0
        %800 = vmatpush2.xpose.msra.mxu0 0.0
        %801 = vmatprep.subr.mxu0 0.0
        %802 = vmatpush2.xpose.msra.mxu0 0.0
        %803 = vmatprep.subr.mxu0 0.0
        %804 = vmatpush2.xpose.msra.mxu0 0.0
        %805 = vmatprep.subr.mxu0 0.0
        %806 = vmatpush2.xpose.msra.mxu0 0.0
        %807 = vmatprep.subr.mxu0 0.0
        %808 = vmatpush2.xpose.msra.mxu0 0.0
        %809 = vmatprep.subr.mxu0 0.0
        %810 = vmatpush2.xpose.msra.mxu0 0.0
        %811 = vmatprep.mubr.f32.mxu0 0.0
        %812 = vmatmul.mubr.f32.gmra.mxu0 %v667
        %v813 = vpop.f32.mrf.mxu0
        %v814 = vadd.f32 %v612, %v813
        %v815 = vpop.f32.mrf.mxu0
        %816 = vmatprep.mubr.f32.mxu0 0.0
        %817 = vmatmul.mubr.f32.gmra.mxu0 %v670
        %v818 = vpop.f32.mrf.mxu0
        %v819 = vadd.f32 %v617, %v818
        %v820 = vpop.f32.mrf.mxu0
        %821 = vmatprep.mubr.f32.mxu0 0.0
        %822 = vmatmul.mubr.f32.gmra.mxu0 %v673
        %v823 = vpop.f32.mrf.mxu0
        %v824 = vadd.f32 %v622, %v823
        %v825 = vpop.f32.mrf.mxu0
        %826 = vmatprep.mubr.f32.mxu0 0.0
        %827 = vmatmul.mubr.f32.gmra.mxu0 %v676
        %v828 = vpop.f32.mrf.mxu0
        %v829 = vadd.f32 %v627, %v828
        %v830 = vpop.f32.mrf.mxu0
        %831 = vmatprep.mubr.f32.mxu0 0.0
        %832 = vmatmul.mubr.f32.gmra.mxu0 %v679
        %v833 = vpop.f32.mrf.mxu0
        %v834 = vadd.f32 %v632, %v833
        %v835 = vpop.f32.mrf.mxu0
        %836 = vmatprep.mubr.f32.mxu0 0.0
        %837 = vmatmul.mubr.f32.gmra.mxu0 %v682
        %v838 = vpop.f32.mrf.mxu0
        %v839 = vadd.f32 %v637, %v838
        %v840 = vpop.f32.mrf.mxu0
        %841 = vmatprep.mubr.f32.mxu0 0.0
        %842 = vmatmul.mubr.f32.gmra.mxu0 %v685
        %v843 = vpop.f32.mrf.mxu0
        %v844 = vadd.f32 %v642, %v843
        %v845 = vpop.f32.mrf.mxu0
        %846 = vmatprep.mubr.f32.mxu0 0.0
        %847 = vmatmul.mubr.f32.gmra.mxu0 %v688
        %v848 = vpop.f32.mrf.mxu0
        %v849 = vadd.f32 %v647, %v848
        %v850 = vpop.f32.mrf.mxu0
        %851 = vmatprep.mubr.f32.mxu0 0.0
        %852 = vmatmul.mubr.f32.gmra.mxu0 %v691
        %v853 = vpop.f32.mrf.mxu0
        %v854 = vadd.f32 %v652, %v853
        %v855 = vpop.f32.mrf.mxu0
        %856 = vmatprep.mubr.f32.mxu0 0.0
        %857 = vmatmul.mubr.f32.gmra.mxu0 %v694
        %v858 = vpop.f32.mrf.mxu0
        %v859 = vadd.f32 %v657, %v858
        %v860 = vpop.f32.mrf.mxu0
        %861 = vmatprep.mubr.f32.mxu0 0.0
        %862 = vmatmul.mubr.f32.gmra.mxu0 %v697
        %v863 = vpop.f32.mrf.mxu0
        %v864 = vadd.f32 %v662, %v863
        %v865 = vpop.f32.mrf.mxu0
        %866 = vdwg.mxu0
        %v867 = vld [vmem:[%s7] sm:$0xff]
        %v868 = vld [vmem:[%s7 + $0x8] sm:$0xff]
        %v869 = vld [vmem:[%s7 + $0x10] sm:$0xff]
        %v870 = vld [vmem:[%s7 + $0x18] sm:$0xff]
        %v871 = vld [vmem:[%s7 + $0x20] sm:$0xff]
        %v872 = vld [vmem:[%s7 + $0x28] sm:$0xff]
        %v873 = vld [vmem:[%s7 + $0x30] sm:$0xff]
        %v874 = vld [vmem:[%s7 + $0x38] sm:$0xff]
        %v875 = vld [vmem:[%s7 + $0x40] sm:$0xff]
        %v876 = vld [vmem:[%s7 + $0x48] sm:$0xff]
        %v877 = vld [vmem:[%s7 + $0x50] sm:$0xff]
        %v878 = vld [vmem:[%s7 + $0x58] sm:$0xff]
        %v879 = vld [vmem:[%s7 + $0x60] sm:$0xff]
        %v880 = vld [vmem:[%s7 + $0x68] sm:$0xff]
        %v881 = vld [vmem:[%s7 + $0x70] sm:$0xff]
        %v882 = vld [vmem:[%s7 + $0x78] sm:$0xff]
        %v883 = vld [vmem:[%s7 + $0x80] sm:$0xff]
        %v884 = vld [vmem:[%s7 + $0x88] sm:$0xff]
        %v885 = vld [vmem:[%s7 + $0x90] sm:$0xff]
        %v886 = vld [vmem:[%s7 + $0x98] sm:$0xff]
        %v887 = vld [vmem:[%s7 + $0xa0] sm:$0xff]
        %v888 = vld [vmem:[%s7 + $0xa8] sm:$0xff]
        %v889 = vld [vmem:[%s7 + $0xb0] sm:$0xff]
        %v890 = vld [vmem:[%s7 + $0xb8] sm:$0xff]
        %v891 = vld [vmem:[%s7 + $0xc0] sm:$0xff]
        %v892 = vld [vmem:[%s7 + $0xc8] sm:$0xff]
        %v893 = vld [vmem:[%s7 + $0xd0] sm:$0xff]
        %v894 = vld [vmem:[%s7 + $0xd8] sm:$0xff]
        %v895 = vld [vmem:[%s7 + $0xe0] sm:$0xff]
        %v896 = vld [vmem:[%s7 + $0xe8] sm:$0xff]
        %v897 = vld [vmem:[%s7 + $0xf0] sm:$0xff]
        %v898 = vld [vmem:[%s7 + $0xf8] sm:$0xff]
        %v899 = vld [vmem:[%s7 + $0x100] sm:$0xff]
        %v900 = vld [vmem:[%s7 + $0x108] sm:$0xff]
        %v901 = vld [vmem:[%s7 + $0x110] sm:$0xff]
        %v902 = vld [vmem:[%s7 + $0x118] sm:$0xff]
        %v903 = vld [vmem:[%s7 + $0x120] sm:$0xff]
        %v904 = vld [vmem:[%s7 + $0x128] sm:$0xff]
        %v905 = vld [vmem:[%s7 + $0x130] sm:$0xff]
        %v906 = vld [vmem:[%s7 + $0x138] sm:$0xff]
        %v907 = vld [vmem:[%s6] sm:$0xff]
        %v908 = vld [vmem:[%s6 + $0x8] sm:$0xff]
        %v909 = vld [vmem:[%s6 + $0x10] sm:$0xff]
        %v910 = vld [vmem:[%s6 + $0x18] sm:$0xff]
        %v911 = vld [vmem:[%s6 + $0x20] sm:$0xff]
        %v912 = vld [vmem:[%s6 + $0x28] sm:$0xff]
        %v913 = vld [vmem:[%s6 + $0x30] sm:$0xff]
        %v914 = vld [vmem:[%s6 + $0x38] sm:$0xff]
        %v915 = vld [vmem:[%s6 + $0x40] sm:$0xff]
        %v916 = vld [vmem:[%s6 + $0x48] sm:$0xff]
        %v917 = vld [vmem:[%s6 + $0x50] sm:$0xff]
        %v918 = vld [vmem:[%s6 + $0x58] sm:$0xff]
        %v919 = vld [vmem:[%s6 + $0x60] sm:$0xff]
        %v920 = vld [vmem:[%s6 + $0x68] sm:$0xff]
        %v921 = vld [vmem:[%s6 + $0x70] sm:$0xff]
        %v922 = vld [vmem:[%s6 + $0x78] sm:$0xff]
        %v923 = vld [vmem:[%s6 + $0x80] sm:$0xff]
        %v924 = vld [vmem:[%s6 + $0x88] sm:$0xff]
        %v925 = vld [vmem:[%s6 + $0x90] sm:$0xff]
        %v926 = vld [vmem:[%s6 + $0x98] sm:$0xff]
        %v927 = vld [vmem:[%s6 + $0xa0] sm:$0xff]
        %v928 = vld [vmem:[%s6 + $0xa8] sm:$0xff]
        %v929 = vld [vmem:[%s6 + $0xb0] sm:$0xff]
        %v930 = vld [vmem:[%s6 + $0xb8] sm:$0xff]
        %v931 = vld [vmem:[%s6 + $0xc0] sm:$0xff]
        %v932 = vld [vmem:[%s6 + $0xc8] sm:$0xff]
        %v933 = vld [vmem:[%s6 + $0xd0] sm:$0xff]
        %v934 = vld [vmem:[%s6 + $0xd8] sm:$0xff]
        %v935 = vld [vmem:[%s6 + $0xe0] sm:$0xff]
        %v936 = vld [vmem:[%s6 + $0xe8] sm:$0xff]
        %v937 = vld [vmem:[%s5] sm:$0xff]
        %v938 = vld [vmem:[%s5 + $0x8] sm:$0xff]
        %v939 = vld [vmem:[%s5 + $0x10] sm:$0xff]
        %v940 = vld [vmem:[%s5 + $0x18] sm:$0xff]
        %v941 = vld [vmem:[%s5 + $0x20] sm:$0xff]
        %v942 = vld [vmem:[%s5 + $0x28] sm:$0xff]
        %v943 = vld [vmem:[%s5 + $0x30] sm:$0xff]
        %v944 = vld [vmem:[%s5 + $0x38] sm:$0xff]
        %v945 = vld [vmem:[%s5 + $0x40] sm:$0xff]
        %v946 = vld [vmem:[%s5 + $0x48] sm:$0xff]
        %v947 = vld [vmem:[%s403] sm:$0xff]
        %v948 = vld [vmem:[%s403 + $0x8] sm:$0xff]
        %v949 = vld [vmem:[%s403 + $0x10] sm:$0xff]
        %v950 = vld [vmem:[%s403 + $0x18] sm:$0xff]
        %v951 = vld [vmem:[%s403 + $0x20] sm:$0xff]
        %v952 = vld [vmem:[%s403 + $0x28] sm:$0xff]
        %v953 = vld [vmem:[%s403 + $0x30] sm:$0xff]
        %v954 = vld [vmem:[%s403 + $0x38] sm:$0xff]
        %v955 = vld [vmem:[%s403 + $0x40] sm:$0xff]
        %v956 = vld [vmem:[%s403 + $0x48] sm:$0xff]
        %v957 = vld [vmem:[%s403 + $0x50] sm:$0xff]
        %v958 = vld [vmem:[%s403 + $0x58] sm:$0xff]
        %v959 = vld [vmem:[%s403 + $0x60] sm:$0xff]
        %v960 = vld [vmem:[%s403 + $0x68] sm:$0xff]
        %v961 = vld [vmem:[%s403 + $0x70] sm:$0xff]
        %v962 = vld [vmem:[%s403 + $0x78] sm:$0xff]
        %964 = vset.pattern.permute.xlu0 0
        %965 = vperm.xlu0 %964, %v867
        %v966 = vpop.permute.xlu0 %965
        %969 = vset.pattern.permute.xlu0 0
        %970 = vperm.xlu0 %969, %v868
        %v971 = vpop.permute.xlu0 %970
        %974 = vset.pattern.permute.xlu0 0
        %975 = vperm.xlu0 %974, %v869
        %v976 = vpop.permute.xlu0 %975
        %979 = vset.pattern.permute.xlu0 0
        %980 = vperm.xlu0 %979, %v870
        %v981 = vpop.permute.xlu0 %980
        %984 = vset.pattern.permute.xlu0 0
        %985 = vperm.xlu0 %984, %v871
        %v986 = vpop.permute.xlu0 %985
        %989 = vset.pattern.permute.xlu0 0
        %990 = vperm.xlu0 %989, %v872
        %v991 = vpop.permute.xlu0 %990
        %994 = vset.pattern.permute.xlu0 0
        %995 = vperm.xlu0 %994, %v873
        %v996 = vpop.permute.xlu0 %995
        %999 = vset.pattern.permute.xlu0 0
        %1000 = vperm.xlu0 %999, %v874
        %v1001 = vpop.permute.xlu0 %1000
        %1004 = vset.pattern.permute.xlu0 0
        %1005 = vperm.xlu0 %1004, %v875
        %v1006 = vpop.permute.xlu0 %1005
        %1009 = vset.pattern.permute.xlu0 0
        %1010 = vperm.xlu0 %1009, %v876
        %v1011 = vpop.permute.xlu0 %1010
        %vm1013 = vcmask 15360
        %v1015 = vsel %vm1013, %v937, 0
        %v1018 = vsel %vm1013, %v938, 0
        %v1021 = vsel %vm1013, %v939, 0
        %v1024 = vsel %vm1013, %v940, 0
        %v1027 = vsel %vm1013, %v941, 0
        %v1030 = vsel %vm1013, %v942, 0
        %v1033 = vsel %vm1013, %v943, 0
        %v1036 = vsel %vm1013, %v944, 0
        %v1039 = vsel %vm1013, %v945, 0
        %v1042 = vsel %vm1013, %v946, 0
        %v1045 = vsel %vm1013, %v947, 0
        %v1048 = vsel %vm1013, %v948, 0
        %v1051 = vsel %vm1013, %v949, 0
        %v1054 = vsel %vm1013, %v950, 0
        %v1057 = vsel %vm1013, %v951, 0
        %v1060 = vsel %vm1013, %v952, 0
        %v1063 = vsel %vm1013, %v953, 0
        %v1066 = vsel %vm1013, %v954, 0
        %v1069 = vsel %vm1013, %v955, 0
        %v1072 = vsel %vm1013, %v956, 0
        %v1075 = vsel %vm1013, %v957, 0
        %v1078 = vsel %vm1013, %v958, 0
        %v1081 = vsel %vm1013, %v959, 0
        %v1084 = vsel %vm1013, %v960, 0
        %v1087 = vsel %vm1013, %v961, 0
        %v1090 = vsel %vm1013, %v962, 0
        %1092 = vmatprep.subr.mxu0 0.0
        %1093 = vmatpush1.xpose.msra.mxu0 %v1090
        %1094 = vmatprep.subr.mxu0 0.0
        %1095 = vmatpush1.xpose.msra.mxu0 %v1087
        %1096 = vmatprep.subr.mxu0 0.0
        %1097 = vmatpush1.xpose.msra.mxu0 %v1084
        %1098 = vmatprep.subr.mxu0 0.0
        %1099 = vmatpush1.xpose.msra.mxu0 %v1081
        %1100 = vmatprep.subr.mxu0 0.0
        %1101 = vmatpush1.xpose.msra.mxu0 %v1078
        %1102 = vmatprep.subr.mxu0 0.0
        %1103 = vmatpush1.xpose.msra.mxu0 %v1075
        %1104 = vmatprep.subr.mxu0 0.0
        %1105 = vmatpush1.xpose.msra.mxu0 %v1072
        %1106 = vmatprep.subr.mxu0 0.0
        %1107 = vmatpush1.xpose.msra.mxu0 %v1069
        %1108 = vmatprep.subr.mxu0 0.0
        %1109 = vmatpush1.xpose.msra.mxu0 %v1066
        %1110 = vmatprep.subr.mxu0 0.0
        %1111 = vmatpush1.xpose.msra.mxu0 %v1063
        %1112 = vmatprep.subr.mxu0 0.0
        %1113 = vmatpush1.xpose.msra.mxu0 %v1060
        %1114 = vmatprep.subr.mxu0 0.0
        %1115 = vmatpush1.xpose.msra.mxu0 %v1057
        %1116 = vmatprep.subr.mxu0 0.0
        %1117 = vmatpush1.xpose.msra.mxu0 %v1054
        %1118 = vmatprep.subr.mxu0 0.0
        %1119 = vmatpush1.xpose.msra.mxu0 %v1051
        %1120 = vmatprep.subr.mxu0 0.0
        %1121 = vmatpush1.xpose.msra.mxu0 %v1048
        %1122 = vmatprep.subr.mxu0 0.0
        %1123 = vmatpush1.xpose.msra.mxu0 %v1045
        %1124 = vmatprep.subr.mxu0 0.0
        %1125 = vmatpush2.xpose.msra.mxu0 0.0
        %1126 = vmatprep.subr.mxu0 0.0
        %1127 = vmatpush2.xpose.msra.mxu0 0.0
        %1128 = vmatprep.subr.mxu0 0.0
        %1129 = vmatpush2.xpose.msra.mxu0 0.0
        %1130 = vmatprep.subr.mxu0 0.0
        %1131 = vmatpush2.xpose.msra.mxu0 0.0
        %1132 = vmatprep.subr.mxu0 0.0
        %1133 = vmatpush2.xpose.msra.mxu0 0.0
        %1134 = vmatprep.subr.mxu0 0.0
        %1135 = vmatpush2.xpose.msra.mxu0 0.0
        %1136 = vmatprep.subr.mxu0 0.0
        %1137 = vmatpush2.xpose.msra.mxu0 0.0
        %1138 = vmatprep.subr.mxu0 0.0
        %1139 = vmatpush2.xpose.msra.mxu0 0.0
        %1140 = vmatprep.subr.mxu0 0.0
        %1141 = vmatpush2.xpose.msra.mxu0 0.0
        %1142 = vmatprep.subr.mxu0 0.0
        %1143 = vmatpush2.xpose.msra.mxu0 0.0
        %1144 = vmatprep.subr.mxu0 0.0
        %1145 = vmatpush2.xpose.msra.mxu0 0.0
        %1146 = vmatprep.subr.mxu0 0.0
        %1147 = vmatpush2.xpose.msra.mxu0 0.0
        %1148 = vmatprep.subr.mxu0 0.0
        %1149 = vmatpush2.xpose.msra.mxu0 0.0
        %1150 = vmatprep.subr.mxu0 0.0
        %1151 = vmatpush2.xpose.msra.mxu0 0.0
        %1152 = vmatprep.subr.mxu0 0.0
        %1153 = vmatpush2.xpose.msra.mxu0 0.0
        %1154 = vmatprep.subr.mxu0 0.0
        %1155 = vmatpush2.xpose.msra.mxu0 0.0
        %1156 = vmatprep.mubr.f32.mxu0 0.0
        %1157 = vmatmul.mubr.f32.gmra.mxu0 %v1015
        %v1158 = vpop.f32.mrf.mxu0
        %v1159 = vadd.f32 %v966, %v1158
        %v1160 = vpop.f32.mrf.mxu0
        %1161 = vmatprep.mubr.f32.mxu0 0.0
        %1162 = vmatmul.mubr.f32.gmra.mxu0 %v1018
        %v1163 = vpop.f32.mrf.mxu0
        %v1164 = vadd.f32 %v971, %v1163
        %v1165 = vpop.f32.mrf.mxu0
        %1166 = vmatprep.mubr.f32.mxu0 0.0
        %1167 = vmatmul.mubr.f32.gmra.mxu0 %v1021
        %v1168 = vpop.f32.mrf.mxu0
        %v1169 = vadd.f32 %v976, %v1168
        %v1170 = vpop.f32.mrf.mxu0
        %1171 = vmatprep.mubr.f32.mxu0 0.0
        %1172 = vmatmul.mubr.f32.gmra.mxu0 %v1024
        %v1173 = vpop.f32.mrf.mxu0
        %v1174 = vadd.f32 %v981, %v1173
        %v1175 = vpop.f32.mrf.mxu0
        %1176 = vmatprep.mubr.f32.mxu0 0.0
        %1177 = vmatmul.mubr.f32.gmra.mxu0 %v1027
        %v1178 = vpop.f32.mrf.mxu0
        %v1179 = vadd.f32 %v986, %v1178
        %v1180 = vpop.f32.mrf.mxu0
        %1181 = vmatprep.mubr.f32.mxu0 0.0
        %1182 = vmatmul.mubr.f32.gmra.mxu0 %v1030
        %v1183 = vpop.f32.mrf.mxu0
        %v1184 = vadd.f32 %v991, %v1183
        %v1185 = vpop.f32.mrf.mxu0
        %1186 = vmatprep.mubr.f32.mxu0 0.0
        %1187 = vmatmul.mubr.f32.gmra.mxu0 %v1033
        %v1188 = vpop.f32.mrf.mxu0
        %v1189 = vadd.f32 %v996, %v1188
        %v1190 = vpop.f32.mrf.mxu0
        %1191 = vmatprep.mubr.f32.mxu0 0.0
        %1192 = vmatmul.mubr.f32.gmra.mxu0 %v1036
        %v1193 = vpop.f32.mrf.mxu0
        %v1194 = vadd.f32 %v1001, %v1193
        %v1195 = vpop.f32.mrf.mxu0
        %1196 = vmatprep.mubr.f32.mxu0 0.0
        %1197 = vmatmul.mubr.f32.gmra.mxu0 %v1039
        %v1198 = vpop.f32.mrf.mxu0
        %v1199 = vadd.f32 %v1006, %v1198
        %v1200 = vpop.f32.mrf.mxu0
        %1201 = vmatprep.mubr.f32.mxu0 0.0
        %1202 = vmatmul.mubr.f32.gmra.mxu0 %v1042
        %v1203 = vpop.f32.mrf.mxu0
        %v1204 = vadd.f32 %v1011, %v1203
        %v1205 = vpop.f32.mrf.mxu0
        %1206 = vdwg.mxu0
        %v1207 = vtanh.pop %v1159
        %v1208 = vtanh.pop %v1164
        %v1209 = vtanh.pop %v1169
        %v1210 = vtanh.pop %v1174
        %v1211 = vtanh.pop %v1179
        %v1212 = vtanh.pop %v1184
        %v1213 = vtanh.pop %v1189
        %v1214 = vtanh.pop %v1194
        %v1215 = vtanh.pop %v1199
        %v1216 = vtanh.pop %v1204
        %1218 = vset.pattern.permute.xlu0 0
        %1219 = vperm.xlu0 %1218, %v877
        %v1220 = vpop.permute.xlu0 %1219
        %1223 = vset.pattern.permute.xlu0 0
        %1224 = vperm.xlu0 %1223, %v878
        %v1225 = vpop.permute.xlu0 %1224
        %1228 = vset.pattern.permute.xlu0 0
        %1229 = vperm.xlu0 %1228, %v879
        %v1230 = vpop.permute.xlu0 %1229
        %1233 = vset.pattern.permute.xlu0 0
        %1234 = vperm.xlu0 %1233, %v880
        %v1235 = vpop.permute.xlu0 %1234
        %1238 = vset.pattern.permute.xlu0 0
        %1239 = vperm.xlu0 %1238, %v881
        %v1240 = vpop.permute.xlu0 %1239
        %1243 = vset.pattern.permute.xlu0 0
        %1244 = vperm.xlu0 %1243, %v882
        %v1245 = vpop.permute.xlu0 %1244
        %1248 = vset.pattern.permute.xlu0 0
        %1249 = vperm.xlu0 %1248, %v883
        %v1250 = vpop.permute.xlu0 %1249
        %1253 = vset.pattern.permute.xlu0 0
        %1254 = vperm.xlu0 %1253, %v884
        %v1255 = vpop.permute.xlu0 %1254
        %1258 = vset.pattern.permute.xlu0 0
        %1259 = vperm.xlu0 %1258, %v885
        %v1260 = vpop.permute.xlu0 %1259
        %1263 = vset.pattern.permute.xlu0 0
        %1264 = vperm.xlu0 %1263, %v886
        %v1265 = vpop.permute.xlu0 %1264
        %vm1267 = vcmask 654336
        %v1269 = vsel %vm1267, %v907, 0
        %v1272 = vsel %vm1267, %v908, 0
        %v1275 = vsel %vm1267, %v909, 0
        %v1278 = vsel %vm1267, %v910, 0
        %v1281 = vsel %vm1267, %v911, 0
        %v1284 = vsel %vm1267, %v912, 0
        %v1287 = vsel %vm1267, %v913, 0
        %v1290 = vsel %vm1267, %v914, 0
        %v1293 = vsel %vm1267, %v915, 0
        %v1296 = vsel %vm1267, %v916, 0
        %1298 = vmatprep.subr.mxu0 0.0
        %1299 = vmatpush1.msra.mxu0 0.0
        %1300 = vmatprep.subr.mxu0 0.0
        %1301 = vmatpush1.msra.mxu0 0.0
        %1302 = vmatprep.subr.mxu0 0.0
        %1303 = vmatpush1.msra.mxu0 0.0
        %1304 = vmatprep.subr.mxu0 0.0
        %1305 = vmatpush1.msra.mxu0 0.0
        %1306 = vmatprep.subr.mxu0 0.0
        %1307 = vmatpush1.msra.mxu0 0.0
        %1308 = vmatprep.subr.mxu0 0.0
        %1309 = vmatpush1.msra.mxu0 0.0
        %1310 = vmatprep.subr.mxu0 0.0
        %1311 = vmatpush1.msra.mxu0 %v1216
        %1312 = vmatprep.subr.mxu0 0.0
        %1313 = vmatpush1.msra.mxu0 %v1215
        %1314 = vmatprep.subr.mxu0 0.0
        %1315 = vmatpush1.msra.mxu0 %v1214
        %1316 = vmatprep.subr.mxu0 0.0
        %1317 = vmatpush1.msra.mxu0 %v1213
        %1318 = vmatprep.subr.mxu0 0.0
        %1319 = vmatpush1.msra.mxu0 %v1212
        %1320 = vmatprep.subr.mxu0 0.0
        %1321 = vmatpush1.msra.mxu0 %v1211
        %1322 = vmatprep.subr.mxu0 0.0
        %1323 = vmatpush1.msra.mxu0 %v1210
        %1324 = vmatprep.subr.mxu0 0.0
        %1325 = vmatpush1.msra.mxu0 %v1209
        %1326 = vmatprep.subr.mxu0 0.0
        %1327 = vmatpush1.msra.mxu0 %v1208
        %1328 = vmatprep.subr.mxu0 0.0
        %1329 = vmatpush1.msra.mxu0 %v1207
        %1330 = vmatprep.subr.mxu0 0.0
        %1331 = vmatpush2.msra.mxu0 0.0
        %1332 = vmatprep.subr.mxu0 0.0
        %1333 = vmatpush2.msra.mxu0 0.0
        %1334 = vmatprep.subr.mxu0 0.0
        %1335 = vmatpush2.msra.mxu0 0.0
        %1336 = vmatprep.subr.mxu0 0.0
        %1337 = vmatpush2.msra.mxu0 0.0
        %1338 = vmatprep.subr.mxu0 0.0
        %1339 = vmatpush2.msra.mxu0 0.0
        %1340 = vmatprep.subr.mxu0 0.0
        %1341 = vmatpush2.msra.mxu0 0.0
        %1342 = vmatprep.subr.mxu0 0.0
        %1343 = vmatpush2.msra.mxu0 0.0
        %1344 = vmatprep.subr.mxu0 0.0
        %1345 = vmatpush2.msra.mxu0 0.0
        %1346 = vmatprep.subr.mxu0 0.0
        %1347 = vmatpush2.msra.mxu0 0.0
        %1348 = vmatprep.subr.mxu0 0.0
        %1349 = vmatpush2.msra.mxu0 0.0
        %1350 = vmatprep.subr.mxu0 0.0
        %1351 = vmatpush2.msra.mxu0 0.0
        %1352 = vmatprep.subr.mxu0 0.0
        %1353 = vmatpush2.msra.mxu0 0.0
        %1354 = vmatprep.subr.mxu0 0.0
        %1355 = vmatpush2.msra.mxu0 0.0
        %1356 = vmatprep.subr.mxu0 0.0
        %1357 = vmatpush2.msra.mxu0 0.0
        %1358 = vmatprep.subr.mxu0 0.0
        %1359 = vmatpush2.msra.mxu0 0.0
        %1360 = vmatprep.subr.mxu0 0.0
        %1361 = vmatpush2.msra.mxu0 0.0
        %1362 = vmatprep.mubr.f32.mxu0 0.0
        %1363 = vmatmul.mubr.f32.gmra.mxu0 %v1269
        %v1364 = vpop.f32.mrf.mxu0
        %v1365 = vadd.f32 %v1220, %v1364
        %v1366 = vpop.f32.mrf.mxu0
        %1367 = vmatprep.mubr.f32.mxu0 0.0
        %1368 = vmatmul.mubr.f32.gmra.mxu0 %v1272
        %v1369 = vpop.f32.mrf.mxu0
        %v1370 = vadd.f32 %v1225, %v1369
        %v1371 = vpop.f32.mrf.mxu0
        %1372 = vmatprep.mubr.f32.mxu0 0.0
        %1373 = vmatmul.mubr.f32.gmra.mxu0 %v1275
        %v1374 = vpop.f32.mrf.mxu0
        %v1375 = vadd.f32 %v1230, %v1374
        %v1376 = vpop.f32.mrf.mxu0
        %1377 = vmatprep.mubr.f32.mxu0 0.0
        %1378 = vmatmul.mubr.f32.gmra.mxu0 %v1278
        %v1379 = vpop.f32.mrf.mxu0
        %v1380 = vadd.f32 %v1235, %v1379
        %v1381 = vpop.f32.mrf.mxu0
        %1382 = vmatprep.mubr.f32.mxu0 0.0
        %1383 = vmatmul.mubr.f32.gmra.mxu0 %v1281
        %v1384 = vpop.f32.mrf.mxu0
        %v1385 = vadd.f32 %v1240, %v1384
        %v1386 = vpop.f32.mrf.mxu0
        %1387 = vmatprep.mubr.f32.mxu0 0.0
        %1388 = vmatmul.mubr.f32.gmra.mxu0 %v1284
        %v1389 = vpop.f32.mrf.mxu0
        %v1390 = vadd.f32 %v1245, %v1389
        %v1391 = vpop.f32.mrf.mxu0
        %1392 = vmatprep.mubr.f32.mxu0 0.0
        %1393 = vmatmul.mubr.f32.gmra.mxu0 %v1287
        %v1394 = vpop.f32.mrf.mxu0
        %v1395 = vadd.f32 %v1250, %v1394
        %v1396 = vpop.f32.mrf.mxu0
        %1397 = vmatprep.mubr.f32.mxu0 0.0
        %1398 = vmatmul.mubr.f32.gmra.mxu0 %v1290
        %v1399 = vpop.f32.mrf.mxu0
        %v1400 = vadd.f32 %v1255, %v1399
        %v1401 = vpop.f32.mrf.mxu0
        %1402 = vmatprep.mubr.f32.mxu0 0.0
        %1403 = vmatmul.mubr.f32.gmra.mxu0 %v1293
        %v1404 = vpop.f32.mrf.mxu0
        %v1405 = vadd.f32 %v1260, %v1404
        %v1406 = vpop.f32.mrf.mxu0
        %1407 = vmatprep.mubr.f32.mxu0 0.0
        %1408 = vmatmul.mubr.f32.gmra.mxu0 %v1296
        %v1409 = vpop.f32.mrf.mxu0
        %v1410 = vadd.f32 %v1265, %v1409
        %v1411 = vpop.f32.mrf.mxu0
        %1412 = vdwg.mxu0
        %v1413 = vtanh.pop %v1365
        %v1414 = vtanh.pop %v1370
        %v1415 = vtanh.pop %v1375
        %v1416 = vtanh.pop %v1380
        %v1417 = vtanh.pop %v1385
        %v1418 = vtanh.pop %v1390
        %v1419 = vtanh.pop %v1395
        %v1420 = vtanh.pop %v1400
        %v1421 = vtanh.pop %v1405
        %v1422 = vtanh.pop %v1410
        %1424 = vset.pattern.permute.xlu0 0
        %1425 = vperm.xlu0 %1424, %v887
        %v1426 = vpop.permute.xlu0 %1425
        %1429 = vset.pattern.permute.xlu0 0
        %1430 = vperm.xlu0 %1429, %v888
        %v1431 = vpop.permute.xlu0 %1430
        %1434 = vset.pattern.permute.xlu0 0
        %1435 = vperm.xlu0 %1434, %v889
        %v1436 = vpop.permute.xlu0 %1435
        %1439 = vset.pattern.permute.xlu0 0
        %1440 = vperm.xlu0 %1439, %v890
        %v1441 = vpop.permute.xlu0 %1440
        %1444 = vset.pattern.permute.xlu0 0
        %1445 = vperm.xlu0 %1444, %v891
        %v1446 = vpop.permute.xlu0 %1445
        %1449 = vset.pattern.permute.xlu0 0
        %1450 = vperm.xlu0 %1449, %v892
        %v1451 = vpop.permute.xlu0 %1450
        %1454 = vset.pattern.permute.xlu0 0
        %1455 = vperm.xlu0 %1454, %v893
        %v1456 = vpop.permute.xlu0 %1455
        %1459 = vset.pattern.permute.xlu0 0
        %1460 = vperm.xlu0 %1459, %v894
        %v1461 = vpop.permute.xlu0 %1460
        %1464 = vset.pattern.permute.xlu0 0
        %1465 = vperm.xlu0 %1464, %v895
        %v1466 = vpop.permute.xlu0 %1465
        %1469 = vset.pattern.permute.xlu0 0
        %1470 = vperm.xlu0 %1469, %v896
        %v1471 = vpop.permute.xlu0 %1470
        %v1474 = vsel %vm1267, %v917, 0
        %v1477 = vsel %vm1267, %v918, 0
        %v1480 = vsel %vm1267, %v919, 0
        %v1483 = vsel %vm1267, %v920, 0
        %v1486 = vsel %vm1267, %v921, 0
        %v1489 = vsel %vm1267, %v922, 0
        %v1492 = vsel %vm1267, %v923, 0
        %v1495 = vsel %vm1267, %v924, 0
        %v1498 = vsel %vm1267, %v925, 0
        %v1501 = vsel %vm1267, %v926, 0
        %1503 = vmatprep.subr.mxu0 0.0
        %1504 = vmatpush1.msra.mxu0 0.0
        %1505 = vmatprep.subr.mxu0 0.0
        %1506 = vmatpush1.msra.mxu0 0.0
        %1507 = vmatprep.subr.mxu0 0.0
        %1508 = vmatpush1.msra.mxu0 0.0
        %1509 = vmatprep.subr.mxu0 0.0
        %1510 = vmatpush1.msra.mxu0 0.0
        %1511 = vmatprep.subr.mxu0 0.0
        %1512 = vmatpush1.msra.mxu0 0.0
        %1513 = vmatprep.subr.mxu0 0.0
        %1514 = vmatpush1.msra.mxu0 0.0
        %1515 = vmatprep.subr.mxu0 0.0
        %1516 = vmatpush1.msra.mxu0 %v1422
        %1517 = vmatprep.subr.mxu0 0.0
        %1518 = vmatpush1.msra.mxu0 %v1421
        %1519 = vmatprep.subr.mxu0 0.0
        %1520 = vmatpush1.msra.mxu0 %v1420
        %1521 = vmatprep.subr.mxu0 0.0
        %1522 = vmatpush1.msra.mxu0 %v1419
        %1523 = vmatprep.subr.mxu0 0.0
        %1524 = vmatpush1.msra.mxu0 %v1418
        %1525 = vmatprep.subr.mxu0 0.0
        %1526 = vmatpush1.msra.mxu0 %v1417
        %1527 = vmatprep.subr.mxu0 0.0
        %1528 = vmatpush1.msra.mxu0 %v1416
        %1529 = vmatprep.subr.mxu0 0.0
        %1530 = vmatpush1.msra.mxu0 %v1415
        %1531 = vmatprep.subr.mxu0 0.0
        %1532 = vmatpush1.msra.mxu0 %v1414
        %1533 = vmatprep.subr.mxu0 0.0
        %1534 = vmatpush1.msra.mxu0 %v1413
        %1535 = vmatprep.subr.mxu0 0.0
        %1536 = vmatpush2.msra.mxu0 0.0
        %1537 = vmatprep.subr.mxu0 0.0
        %1538 = vmatpush2.msra.mxu0 0.0
        %1539 = vmatprep.subr.mxu0 0.0
        %1540 = vmatpush2.msra.mxu0 0.0
        %1541 = vmatprep.subr.mxu0 0.0
        %1542 = vmatpush2.msra.mxu0 0.0
        %1543 = vmatprep.subr.mxu0 0.0
        %1544 = vmatpush2.msra.mxu0 0.0
        %1545 = vmatprep.subr.mxu0 0.0
        %1546 = vmatpush2.msra.mxu0 0.0
        %1547 = vmatprep.subr.mxu0 0.0
        %1548 = vmatpush2.msra.mxu0 0.0
        %1549 = vmatprep.subr.mxu0 0.0
        %1550 = vmatpush2.msra.mxu0 0.0
        %1551 = vmatprep.subr.mxu0 0.0
        %1552 = vmatpush2.msra.mxu0 0.0
        %1553 = vmatprep.subr.mxu0 0.0
        %1554 = vmatpush2.msra.mxu0 0.0
        %1555 = vmatprep.subr.mxu0 0.0
        %1556 = vmatpush2.msra.mxu0 0.0
        %1557 = vmatprep.subr.mxu0 0.0
        %1558 = vmatpush2.msra.mxu0 0.0
        %1559 = vmatprep.subr.mxu0 0.0
        %1560 = vmatpush2.msra.mxu0 0.0
        %1561 = vmatprep.subr.mxu0 0.0
        %1562 = vmatpush2.msra.mxu0 0.0
        %1563 = vmatprep.subr.mxu0 0.0
        %1564 = vmatpush2.msra.mxu0 0.0
        %1565 = vmatprep.subr.mxu0 0.0
        %1566 = vmatpush2.msra.mxu0 0.0
        %1567 = vmatprep.mubr.f32.mxu0 0.0
        %1568 = vmatmul.mubr.f32.gmra.mxu0 %v1474
        %v1569 = vpop.f32.mrf.mxu0
        %v1570 = vadd.f32 %v1426, %v1569
        %v1571 = vpop.f32.mrf.mxu0
        %1572 = vmatprep.mubr.f32.mxu0 0.0
        %1573 = vmatmul.mubr.f32.gmra.mxu0 %v1477
        %v1574 = vpop.f32.mrf.mxu0
        %v1575 = vadd.f32 %v1431, %v1574
        %v1576 = vpop.f32.mrf.mxu0
        %1577 = vmatprep.mubr.f32.mxu0 0.0
        %1578 = vmatmul.mubr.f32.gmra.mxu0 %v1480
        %v1579 = vpop.f32.mrf.mxu0
        %v1580 = vadd.f32 %v1436, %v1579
        %v1581 = vpop.f32.mrf.mxu0
        %1582 = vmatprep.mubr.f32.mxu0 0.0
        %1583 = vmatmul.mubr.f32.gmra.mxu0 %v1483
        %v1584 = vpop.f32.mrf.mxu0
        %v1585 = vadd.f32 %v1441, %v1584
        %v1586 = vpop.f32.mrf.mxu0
        %1587 = vmatprep.mubr.f32.mxu0 0.0
        %1588 = vmatmul.mubr.f32.gmra.mxu0 %v1486
        %v1589 = vpop.f32.mrf.mxu0
        %v1590 = vadd.f32 %v1446, %v1589
        %v1591 = vpop.f32.mrf.mxu0
        %1592 = vmatprep.mubr.f32.mxu0 0.0
        %1593 = vmatmul.mubr.f32.gmra.mxu0 %v1489
        %v1594 = vpop.f32.mrf.mxu0
        %v1595 = vadd.f32 %v1451, %v1594
        %v1596 = vpop.f32.mrf.mxu0
        %1597 = vmatprep.mubr.f32.mxu0 0.0
        %1598 = vmatmul.mubr.f32.gmra.mxu0 %v1492
        %v1599 = vpop.f32.mrf.mxu0
        %v1600 = vadd.f32 %v1456, %v1599
        %v1601 = vpop.f32.mrf.mxu0
        %1602 = vmatprep.mubr.f32.mxu0 0.0
        %1603 = vmatmul.mubr.f32.gmra.mxu0 %v1495
        %v1604 = vpop.f32.mrf.mxu0
        %v1605 = vadd.f32 %v1461, %v1604
        %v1606 = vpop.f32.mrf.mxu0
        %1607 = vmatprep.mubr.f32.mxu0 0.0
        %1608 = vmatmul.mubr.f32.gmra.mxu0 %v1498
        %v1609 = vpop.f32.mrf.mxu0
        %v1610 = vadd.f32 %v1466, %v1609
        %v1611 = vpop.f32.mrf.mxu0
        %1612 = vmatprep.mubr.f32.mxu0 0.0
        %1613 = vmatmul.mubr.f32.gmra.mxu0 %v1501
        %v1614 = vpop.f32.mrf.mxu0
        %v1615 = vadd.f32 %v1471, %v1614
        %v1616 = vpop.f32.mrf.mxu0
        %1617 = vdwg.mxu0
        %v1618 = vtanh.pop %v1570
        %v1619 = vtanh.pop %v1575
        %v1620 = vtanh.pop %v1580
        %v1621 = vtanh.pop %v1585
        %v1622 = vtanh.pop %v1590
        %v1623 = vtanh.pop %v1595
        %v1624 = vtanh.pop %v1600
        %v1625 = vtanh.pop %v1605
        %v1626 = vtanh.pop %v1610
        %v1627 = vtanh.pop %v1615
        %1629 = vset.pattern.permute.xlu0 0
        %1630 = vperm.xlu0 %1629, %v897
        %v1631 = vpop.permute.xlu0 %1630
        %1634 = vset.pattern.permute.xlu0 0
        %1635 = vperm.xlu0 %1634, %v898
        %v1636 = vpop.permute.xlu0 %1635
        %1639 = vset.pattern.permute.xlu0 0
        %1640 = vperm.xlu0 %1639, %v899
        %v1641 = vpop.permute.xlu0 %1640
        %1644 = vset.pattern.permute.xlu0 0
        %1645 = vperm.xlu0 %1644, %v900
        %v1646 = vpop.permute.xlu0 %1645
        %1649 = vset.pattern.permute.xlu0 0
        %1650 = vperm.xlu0 %1649, %v901
        %v1651 = vpop.permute.xlu0 %1650
        %1654 = vset.pattern.permute.xlu0 0
        %1655 = vperm.xlu0 %1654, %v902
        %v1656 = vpop.permute.xlu0 %1655
        %1659 = vset.pattern.permute.xlu0 0
        %1660 = vperm.xlu0 %1659, %v903
        %v1661 = vpop.permute.xlu0 %1660
        %1664 = vset.pattern.permute.xlu0 0
        %1665 = vperm.xlu0 %1664, %v904
        %v1666 = vpop.permute.xlu0 %1665
        %1669 = vset.pattern.permute.xlu0 0
        %1670 = vperm.xlu0 %1669, %v905
        %v1671 = vpop.permute.xlu0 %1670
        %1674 = vset.pattern.permute.xlu0 0
        %1675 = vperm.xlu0 %1674, %v906
        %v1676 = vpop.permute.xlu0 %1675
        %v1679 = vsel %vm1267, %v927, 0
        %v1682 = vsel %vm1267, %v928, 0
        %v1685 = vsel %vm1267, %v929, 0
        %v1688 = vsel %vm1267, %v930, 0
        %v1691 = vsel %vm1267, %v931, 0
        %v1694 = vsel %vm1267, %v932, 0
        %v1697 = vsel %vm1267, %v933, 0
        %v1700 = vsel %vm1267, %v934, 0
        %v1703 = vsel %vm1267, %v935, 0
        %v1706 = vsel %vm1267, %v936, 0
        %1708 = vmatprep.subr.mxu0 0.0
        %1709 = vmatpush1.msra.mxu0 0.0
        %1710 = vmatprep.subr.mxu0 0.0
        %1711 = vmatpush1.msra.mxu0 0.0
        %1712 = vmatprep.subr.mxu0 0.0
        %1713 = vmatpush1.msra.mxu0 0.0
        %1714 = vmatprep.subr.mxu0 0.0
        %1715 = vmatpush1.msra.mxu0 0.0
        %1716 = vmatprep.subr.mxu0 0.0
        %1717 = vmatpush1.msra.mxu0 0.0
        %1718 = vmatprep.subr.mxu0 0.0
        %1719 = vmatpush1.msra.mxu0 0.0
        %1720 = vmatprep.subr.mxu0 0.0
        %1721 = vmatpush1.msra.mxu0 %v1627
        %1722 = vmatprep.subr.mxu0 0.0
        %1723 = vmatpush1.msra.mxu0 %v1626
        %1724 = vmatprep.subr.mxu0 0.0
        %1725 = vmatpush1.msra.mxu0 %v1625
        %1726 = vmatprep.subr.mxu0 0.0
        %1727 = vmatpush1.msra.mxu0 %v1624
        %1728 = vmatprep.subr.mxu0 0.0
        %1729 = vmatpush1.msra.mxu0 %v1623
        %1730 = vmatprep.subr.mxu0 0.0
        %1731 = vmatpush1.msra.mxu0 %v1622
        %1732 = vmatprep.subr.mxu0 0.0
        %1733 = vmatpush1.msra.mxu0 %v1621
        %1734 = vmatprep.subr.mxu0 0.0
        %1735 = vmatpush1.msra.mxu0 %v1620
        %1736 = vmatprep.subr.mxu0 0.0
        %1737 = vmatpush1.msra.mxu0 %v1619
        %1738 = vmatprep.subr.mxu0 0.0
        %1739 = vmatpush1.msra.mxu0 %v1618
        %1740 = vmatprep.subr.mxu0 0.0
        %1741 = vmatpush2.msra.mxu0 0.0
        %1742 = vmatprep.subr.mxu0 0.0
        %1743 = vmatpush2.msra.mxu0 0.0
        %1744 = vmatprep.subr.mxu0 0.0
        %1745 = vmatpush2.msra.mxu0 0.0
        %1746 = vmatprep.subr.mxu0 0.0
        %1747 = vmatpush2.msra.mxu0 0.0
        %1748 = vmatprep.subr.mxu0 0.0
        %1749 = vmatpush2.msra.mxu0 0.0
        %1750 = vmatprep.subr.mxu0 0.0
        %1751 = vmatpush2.msra.mxu0 0.0
        %1752 = vmatprep.subr.mxu0 0.0
        %1753 = vmatpush2.msra.mxu0 0.0
        %1754 = vmatprep.subr.mxu0 0.0
        %1755 = vmatpush2.msra.mxu0 0.0
        %1756 = vmatprep.subr.mxu0 0.0
        %1757 = vmatpush2.msra.mxu0 0.0
        %1758 = vmatprep.subr.mxu0 0.0
        %1759 = vmatpush2.msra.mxu0 0.0
        %1760 = vmatprep.subr.mxu0 0.0
        %1761 = vmatpush2.msra.mxu0 0.0
        %1762 = vmatprep.subr.mxu0 0.0
        %1763 = vmatpush2.msra.mxu0 0.0
        %1764 = vmatprep.subr.mxu0 0.0
        %1765 = vmatpush2.msra.mxu0 0.0
        %1766 = vmatprep.subr.mxu0 0.0
        %1767 = vmatpush2.msra.mxu0 0.0
        %1768 = vmatprep.subr.mxu0 0.0
        %1769 = vmatpush2.msra.mxu0 0.0
        %1770 = vmatprep.subr.mxu0 0.0
        %1771 = vmatpush2.msra.mxu0 0.0
        %1772 = vmatprep.mubr.f32.mxu0 0.0
        %1773 = vmatmul.mubr.f32.gmra.mxu0 %v1679
        %v1774 = vpop.f32.mrf.mxu0
        %v1775 = vadd.f32 %v1631, %v1774
        %v1776 = vpop.f32.mrf.mxu0
        %1777 = vmatprep.mubr.f32.mxu0 0.0
        %1778 = vmatmul.mubr.f32.gmra.mxu0 %v1682
        %v1779 = vpop.f32.mrf.mxu0
        %v1780 = vadd.f32 %v1636, %v1779
        %v1781 = vpop.f32.mrf.mxu0
        %1782 = vmatprep.mubr.f32.mxu0 0.0
        %1783 = vmatmul.mubr.f32.gmra.mxu0 %v1685
        %v1784 = vpop.f32.mrf.mxu0
        %v1785 = vadd.f32 %v1641, %v1784
        %v1786 = vpop.f32.mrf.mxu0
        %1787 = vmatprep.mubr.f32.mxu0 0.0
        %1788 = vmatmul.mubr.f32.gmra.mxu0 %v1688
        %v1789 = vpop.f32.mrf.mxu0
        %v1790 = vadd.f32 %v1646, %v1789
        %v1791 = vpop.f32.mrf.mxu0
        %1792 = vmatprep.mubr.f32.mxu0 0.0
        %1793 = vmatmul.mubr.f32.gmra.mxu0 %v1691
        %v1794 = vpop.f32.mrf.mxu0
        %v1795 = vadd.f32 %v1651, %v1794
        %v1796 = vpop.f32.mrf.mxu0
        %1797 = vmatprep.mubr.f32.mxu0 0.0
        %1798 = vmatmul.mubr.f32.gmra.mxu0 %v1694
        %v1799 = vpop.f32.mrf.mxu0
        %v1800 = vadd.f32 %v1656, %v1799
        %v1801 = vpop.f32.mrf.mxu0
        %1802 = vmatprep.mubr.f32.mxu0 0.0
        %1803 = vmatmul.mubr.f32.gmra.mxu0 %v1697
        %v1804 = vpop.f32.mrf.mxu0
        %v1805 = vadd.f32 %v1661, %v1804
        %v1806 = vpop.f32.mrf.mxu0
        %1807 = vmatprep.mubr.f32.mxu0 0.0
        %1808 = vmatmul.mubr.f32.gmra.mxu0 %v1700
        %v1809 = vpop.f32.mrf.mxu0
        %v1810 = vadd.f32 %v1666, %v1809
        %v1811 = vpop.f32.mrf.mxu0
        %1812 = vmatprep.mubr.f32.mxu0 0.0
        %1813 = vmatmul.mubr.f32.gmra.mxu0 %v1703
        %v1814 = vpop.f32.mrf.mxu0
        %v1815 = vadd.f32 %v1671, %v1814
        %v1816 = vpop.f32.mrf.mxu0
        %1817 = vmatprep.mubr.f32.mxu0 0.0
        %1818 = vmatmul.mubr.f32.gmra.mxu0 %v1706
        %v1819 = vpop.f32.mrf.mxu0
        %v1820 = vadd.f32 %v1676, %v1819
        %v1821 = vpop.f32.mrf.mxu0
        %1822 = vdwg.mxu0
        %v1823 = vtanh.pop %v1775
        %v1824 = vtanh.pop %v1780
        %v1825 = vtanh.pop %v1785
        %v1826 = vtanh.pop %v1790
        %v1827 = vtanh.pop %v1795
        %v1828 = vtanh.pop %v1800
        %v1829 = vtanh.pop %v1805
        %v1830 = vtanh.pop %v1810
        %v1831 = vtanh.pop %v1815
        %v1832 = vtanh.pop %v1820
        %v1833 = vmul.f32 %v814, %v1823
        %v1834 = vmul.f32 %v819, %v1824
        %v1835 = vmul.f32 %v824, %v1825
        %v1836 = vmul.f32 %v829, %v1826
        %v1837 = vmul.f32 %v834, %v1827
        %v1838 = vmul.f32 %v839, %v1828
        %v1839 = vmul.f32 %v844, %v1829
        %v1840 = vmul.f32 %v849, %v1830
        %v1841 = vmul.f32 %v854, %v1831
        %v1842 = vmul.f32 %v859, %v1832
        %v1843 = vadd.f32 %v1833, %v1834
        %v1844 = vadd.f32 %v1843, %v1835
        %v1845 = vadd.f32 %v1844, %v1836
        %v1846 = vadd.f32 %v1845, %v1837
        %v1847 = vadd.f32 %v1846, %v1838
        %v1848 = vadd.f32 %v1847, %v1839
        %v1849 = vadd.f32 %v1848, %v1840
        %v1850 = vadd.f32 %v1849, %v1841
        %v1851 = vadd.f32 %v1850, %v1842
        %v1852 = vrot.slane %v1851, 4
        %v1853 = vadd.f32 %v1851, %v1852
        %v1854 = vrot.slane %v1853, 2
        %v1855 = vadd.f32 %v1853, %v1854
        %v1856 = vrot.slane %v1855, 1
        %v1857 = vadd.f32 %v1855, %v1856
        %v1858 = vadd.f32 %v1857, %v864
        %1859 = vst [vmem:[%s366] sm:$0x1] %v1858
        %s1860 = sand.u32 %s213, 1
        %s1861 = scalar_lea.sflag [#allocation3], %s1860
        %s1862 = sand.u32 %s213, 1
        %s1863 = scalar_lea.vmem [#allocation2], %s1862
        // Predicated region
        $region53: #{tpu_custom_call.1} parent=51 // pred_check
          %p1864 = pneg %p223
        $region54: #{tpu_custom_call.1} parent=51 // pred_check_branch
          %1866 = sbr.rel (%p1864) target = $region56
        $region55: #{tpu_custom_call.1} parent=51 // pred_region
          %s1868 = ssub.s32 16, 16
          %1869 = vsyncadd %s1861, %s1868
          %s1870 = smul.addr %s22, 16
          %s1871 = scalar_lea.hbm %s8, %s1870
          %s1873 = sshll.u32 %s1863, 4
          %s1874 = int_to_ptr.vmem [resolvable:$true] %s1873
          %1876 = dma.vmem_to_hbm [thread:$0]  %s1874, 16, %s1871, %s1861
        $region56: #{tpu_custom_call.1} parent=51 // pred_fallthru
          _
      $region52: #{tpu_custom_call.1} parent=5 // pred_fallthru
        _
      %p1877 = scmp.le.s32.totalorder 2, %s17
      // Predicated region
      $region57: #{tpu_custom_call.1} parent=5 // pred_check
        %p1878 = pneg %p1877
      $region58: #{tpu_custom_call.1} parent=5 // pred_check_branch
        %1880 = sbr.rel (%p1878) target = $region60
      $region59: #{tpu_custom_call.1} parent=5 // pred_region
        %s1881 = ssub.s32 %s17, 2
        // Predicated region
        $region61: #{tpu_custom_call.1} parent=59 // pred_check
          %p1882 = pneg %p229
        $region62: #{tpu_custom_call.1} parent=59 // pred_check_branch
          %1884 = sbr.rel (%p1882) target = $region64
        $region63: #{tpu_custom_call.1} parent=59 // pred_region
          %s1885 = sand.u32 %s214, 1
          %s1886 = scalar_lea.sflag [#allocation3], %s1885
          %s1887 = sand.u32 %s214, 1
          %s1888 = scalar_lea.vmem [#allocation2], %s1887
          %1889 = dma.done %s1886, 16
        $region64: #{tpu_custom_call.1} parent=59 // pred_fallthru
          _
      $region60: #{tpu_custom_call.1} parent=5 // pred_fallthru
        _
    $region6: #{tpu_custom_call.1} parent=1 // loop_footer
      %s21 = sadd.s32 1, %s17
    $region7: #{tpu_custom_call.1} parent=1 // loop_footer_branch
      %16 = sbr.rel target = $region3
    $region8: #{tpu_custom_call.1} parent=1 // loop_exit
      _
    %1890 = vsyncpa [#allocation3], 1
    %s1891 = scalar_lea.sflag [#allocation3], 1
    %1892 = vsyncpa %s1891, 1

</llo_original>
